<compile_context>
chip_gen: v7x
topology: tpu7x:2x2x1
jax: 0.10.0
libtpu: 0.0.40
codegen_flags: <defaults>
</compile_context>

<pallas_src>
import functools

import jax
import jax.numpy as jnp
from jax.experimental import pallas as pl
from jax.experimental.pallas import tpu as pltpu


def _cross_attention_kernel(q_ref, ckv_ref, wkv_ref, wout_ref, bout_ref,
                            o_ref, kv_ref, acc_ref, *, heads, dim_head, scale):
    # q_ref   : (bt, n_q,  dim)
    # ckv_ref : (bt, n_kv, dim)
    # wkv_ref : (dim, 2*inner)          fused [K | V] projection weight
    # wout_ref: (heads, dim_head, dim)  output projection, head-major
    # bout_ref: (1, dim) f32            output projection bias
    # o_ref   : (bt, n_q, dim)
    # kv_ref  : VMEM scratch (bt, n_kv, 2*inner), compute dtype
    # acc_ref : VMEM scratch (bt, n_q, dim), f32
    bt, n_q, dim = q_ref.shape
    n_kv = ckv_ref.shape[1]
    inner = heads * dim_head
    cdt = q_ref.dtype  # compute dtype fed to the MXU

    # ---- fused to_kv projection: one matmul, M = bt*n_kv, N = 2*inner ----
    ckv_flat = ckv_ref[...].reshape(bt * n_kv, dim)
    kv_ref[...] = jnp.dot(
        ckv_flat, wkv_ref[...], preferred_element_type=jnp.float32
    ).astype(cdt).reshape(bt, n_kv, 2 * inner)

    # Fold the softmax scale into q once (touches n_q*dim elems, not n_q*n_kv).
    q_all = (q_ref[...] * scale).astype(cdt)          # (bt, n_q, dim)

    # f32 accumulator for the output projection lives in VMEM scratch.
    acc_ref[...] = jnp.zeros_like(acc_ref)

    # TODO(synk): for large n_kv add a kv-tile grid axis with flash-style
    # online softmax (m/l scratch) so K/V never fully materialize in VMEM
    # (needed at a lower n_kv threshold on v7x's 64 MiB VMEM).
    for h in range(heads):
        lo = h * dim_head
        hi = lo + dim_head
        qh = q_all[:, :, lo:hi]                        # (bt, n_q,  d)
        kh = kv_ref[:, :, lo:hi]                       # (bt, n_kv, d)
        vh = kv_ref[:, :, inner + lo:inner + hi]       # (bt, n_kv, d)

        # Q @ K^T as a batched contraction on the head dim (no materialized
        # transpose through the XLU).
        s = jnp.einsum('bqd,bkd->bqk', qh, kh,
                       preferred_element_type=jnp.float32)  # (bt, n_q, n_kv)

        # Softmax in f32 (v5e has no bf16 VPU/EUP path).  Normalization is
        # deferred: divide the small p@V result, not the probability matrix.
        s = s - jnp.max(s, axis=-1, keepdims=True)
        p = jnp.exp(s)
        denom = jnp.sum(p, axis=-1, keepdims=True)          # (bt, n_q, 1)
        # dropout p=0.0 -> identity

        oh = jnp.einsum('bqk,bkd->bqd', p.astype(cdt), vh,
                        preferred_element_type=jnp.float32)  # (bt, n_q, d)
        oh = oh * pl.reciprocal(denom, approx=True)          # EUP slot (free)

        # Head h's contribution to the output projection; wout_ref[h] is a
        # free leading-axis ref index.
        acc_ref[...] += jnp.einsum('bqd,de->bqe', oh.astype(cdt), wout_ref[h],
                                   preferred_element_type=jnp.float32)

    o_ref[...] = (acc_ref[...]
                  + jnp.broadcast_to(bout_ref[...], (bt, n_q, dim))
                  ).astype(o_ref.dtype)


def _vmem_budget_bytes():
    """~75% of physical VMEM; conservative fallback if the query fails."""
    try:
        phys = pltpu.get_tpu_info().vmem_capacity_bytes
    except Exception:
        phys = 64 * 1024 * 1024  # v7x-safe fallback
    return int(phys * 3 // 4)


def cross_attention(q, cross_kv, w_kv, w_out, b_out, *, heads, dim_head,
                    block_b=None, compute_dtype=None):
    """Pallas cross-attention matching the PyTorch module's forward.

    q:        (B, n_q,  dim)
    cross_kv: (B, n_kv, dim)
    w_kv:     (dim, 2*inner)   fused to_kv weight (inner = heads*dim_head == dim)
    w_out:    (inner, dim)
    b_out:    (dim,)
    returns   (B, n_q, dim), dtype of q.

    compute_dtype: optional MXU operand dtype (e.g. jnp.bfloat16 for full-rate
    MXU on f32 inputs); accumulation stays f32 either way.
    """
    B, n_q, dim = q.shape
    _, n_kv, _ = cross_kv.shape
    inner = heads * dim_head
    assert dim == inner
    scale = float(dim_head) ** -0.5
    out_dtype = q.dtype
    cdt = jnp.dtype(compute_dtype) if compute_dtype is not None else q.dtype

    # One-time wrapper-side casts / reshapes (no lane padding of activations).
    q_c = q.astype(cdt)
    ckv_c = cross_kv.astype(cdt)
    w_kv_c = w_kv.astype(cdt)                                # (dim, 2*inner)
    w_o = w_out.astype(cdt).reshape(heads, dim_head, dim)    # head-major
    b_2d = b_out.reshape(1, dim).astype(jnp.float32)

    # block_b: target M = block_b*n_q ~ 256 (fills v6e/v7x MXU; v5e is full at
    # 128) while keeping >= 2 grid steps when B >= 2 so both v7x TCs get work.
    if block_b is None:
        block_b = max(1, min(B, 256 // max(n_q, 1)))
        if B >= 2 and block_b >= B:
            block_b = max(1, (B + 1) // 2)
    grid_b = pl.cdiv(B, block_b)
    b_padded = grid_b * block_b
    if b_padded != B:  # ragged last block: pad the batch axis once (not lanes)
        q_c = jnp.pad(q_c, ((0, b_padded - B), (0, 0), (0, 0)))
        ckv_c = jnp.pad(ckv_c, ((0, b_padded - B), (0, 0), (0, 0)))

    # VMEM budget from the actual blocks (double-buffered activations/weights
    # + scratch), clamped to ~75% of physical VMEM.
    dsz = jnp.dtype(cdt).itemsize
    block_bytes = 2 * (block_b * n_q * dim * dsz            # q
                       + block_b * n_kv * dim * dsz         # cross_kv
                       + block_b * n_q * dim * jnp.dtype(out_dtype).itemsize  # out
                       + dim * 2 * inner * dsz              # w_kv
                       + heads * dim_head * dim * dsz       # w_out
                       + dim * 4)                           # bias
    scratch_bytes = (block_b * n_kv * 2 * inner * dsz       # kv scratch
                     + block_b * n_q * dim * 4)             # f32 accumulator
    vmem_limit = int(min(max(32 * 1024 * 1024, 2 * (block_bytes + scratch_bytes)),
                         _vmem_budget_bytes()))

    kernel = functools.partial(_cross_attention_kernel, heads=heads,
                               dim_head=dim_head, scale=scale)

    # TODO(synk): single-buffer the constant-index weight/bias inputs via
    # pipeline_mode=pl.Buffered(1) once verified on the target jax version
    # (negligible at this dim; matters for VMEM headroom at large dim on v7x).
    out = pl.pallas_call(
        kernel,
        out_shape=jax.ShapeDtypeStruct((b_padded, n_q, dim), out_dtype),
        grid_spec=pltpu.PrefetchScalarGridSpec(
            num_scalar_prefetch=0,
            grid=(grid_b,),
            in_specs=[
                pl.BlockSpec((block_b, n_q, dim), lambda b: (b, 0, 0)),
                pl.BlockSpec((block_b, n_kv, dim), lambda b: (b, 0, 0)),
                pl.BlockSpec((dim, 2 * inner), lambda b: (0, 0)),
                pl.BlockSpec((heads, dim_head, dim), lambda b: (0, 0, 0)),
                pl.BlockSpec((1, dim), lambda b: (0, 0)),
            ],
            out_specs=pl.BlockSpec((block_b, n_q, dim), lambda b: (b, 0, 0)),
            scratch_shapes=[
                pltpu.VMEM((block_b, n_kv, 2 * inner), cdt),
                pltpu.VMEM((block_b, n_q, dim), jnp.float32),
            ],
        ),
        compiler_params=pltpu.CompilerParams(
            dimension_semantics=("parallel",),
            vmem_limit_bytes=vmem_limit,
        ),
    )(q_c, ckv_c, w_kv_c, w_o, b_2d)

    return out[:B] if b_padded != B else out


def cross_attention_ref(q, cross_kv, w_kv, w_out, b_out, *, heads, dim_head):
    """Pure-JAX reference mirroring the PyTorch forward."""
    B, n_q, dim = q.shape
    inner = heads * dim_head
    kv = jnp.einsum('bnd,de->bne', cross_kv, w_kv)
    k, v = kv[..., :inner], kv[..., inner:]

    def split_heads(t):
        return t.reshape(t.shape[0], t.shape[1], heads, dim_head).transpose(0, 2, 1, 3)

    qq, kk, vv = split_heads(q), split_heads(k), split_heads(v)
    dots = jnp.einsum('bhqd,bhkd->bhqk', qq, kk) * (dim_head ** -0.5)
    attn = jax.nn.softmax(dots, axis=-1)
    out = jnp.einsum('bhqk,bhkd->bhqd', attn, vv)
    out = out.transpose(0, 2, 1, 3).reshape(B, n_q, inner)
    return jnp.einsum('bnd,de->bne', out, w_out) + b_out


if __name__ == "__main__":
    heads, dim_head = 4, 8
    dim = heads * dim_head  # 32 (module asserts dim == inner_dim)
    n_q, n_kv = 8, 8

    key = jax.random.PRNGKey(0)
    k1, k2, k3, k4, k5 = jax.random.split(key, 5)

    # Deterministic synthetic params (shapes per nn.Linear in __init__,
    # stored transposed: (in, out)).
    w_kv = jax.random.normal(k3, (dim, 2 * dim), dtype=jnp.float32) * 0.1
    w_out = jax.random.normal(k4, (dim, dim), dtype=jnp.float32) * 0.1
    b_out = jax.random.normal(k5, (dim,), dtype=jnp.float32) * 0.1

    ok = True
    # Case 1: B=2 (even grid split -> 2 parallel grid steps).
    # Case 2: B=3 (ragged batch -> cdiv grid + one-time batch pad path).
    for B in (2, 3):
        kq, kc = jax.random.split(jax.random.fold_in(k1, B), 2)
        q = jax.random.normal(kq, (B, n_q, dim), dtype=jnp.float32)
        cross_kv = jax.random.normal(kc, (B, n_kv, dim), dtype=jnp.float32)

        out = cross_attention(q, cross_kv, w_kv, w_out, b_out,
                              heads=heads, dim_head=dim_head)
        out = jax.block_until_ready(out)

        ref = cross_attention_ref(q, cross_kv, w_kv, w_out, b_out,
                                  heads=heads, dim_head=dim_head)
        assert out.shape == (B, n_q, dim)
        # approx=True reciprocal (EUP) slightly loosens numerics vs the pure
        # f32 reference; accumulation is f32, so a relaxed tolerance suffices.
        if not jnp.allclose(out, ref, atol=1e-2, rtol=1e-2):
            ok = False
            print("MISMATCH B=%d max_abs_err=%g"
                  % (B, float(jnp.max(jnp.abs(out - ref)))))

    if ok:
        print("KERNEL_OK")
</pallas_src>

<mosaic_0001>
module attributes {stable_mosaic.version = 11 : i64} {
  func.func @_cross_attention_kernel(%arg0: i32, %arg1: memref<1x8x32xf32, #tpu.memory_space<vmem>>, %arg2: memref<1x8x32xf32, #tpu.memory_space<vmem>>, %arg3: memref<32x64xf32, #tpu.memory_space<vmem>>, %arg4: memref<4x8x32xf32, #tpu.memory_space<vmem>>, %arg5: memref<1x32xf32, #tpu.memory_space<vmem>>, %arg6: memref<1x8x32xf32, #tpu.memory_space<vmem>>, %arg7: memref<1x8x64xf32, #tpu.memory_space<vmem>>, %arg8: memref<1x8x32xf32, #tpu.memory_space<vmem>>) attributes {dimension_semantics = [#tpu.dimension_semantics<parallel>], iteration_bounds = array<i64: 2>, scalar_prefetch = 0 : i64, scratch_operands = 2 : i64, tpu.core_type = #tpu.core_type<tc>, window_params = [{transform_indices = @transform_0, window_bounds = array<i64: 1, 8, 32>}, {transform_indices = @transform_1, window_bounds = array<i64: 1, 8, 32>}, {pipeline_mode = #tpu.pipeline_mode<synchronous>, transform_indices = @transform_2, window_bounds = array<i64: 32, 64>}, {pipeline_mode = #tpu.pipeline_mode<synchronous>, transform_indices = @transform_3, window_bounds = array<i64: 4, 8, 32>}, {pipeline_mode = #tpu.pipeline_mode<synchronous>, transform_indices = @transform_4, window_bounds = array<i64: 1, 32>}, {transform_indices = @transform_5, window_bounds = array<i64: 1, 8, 32>}]} {
    %c0 = arith.constant 0 : index
    %c0_0 = arith.constant 0 : index
    %c0_1 = arith.constant 0 : index
    %0 = vector.load %arg2[%c0, %c0_0, %c0_1] : memref<1x8x32xf32, #tpu.memory_space<vmem>>, vector<1x8x32xf32>
    %1 = vector.shape_cast %0 : vector<1x8x32xf32> to vector<8x32xf32>
    %c0_2 = arith.constant 0 : index
    %c0_3 = arith.constant 0 : index
    %2 = vector.load %arg3[%c0_2, %c0_3] : memref<32x64xf32, #tpu.memory_space<vmem>>, vector<32x64xf32>
    %cst = arith.constant dense<0.000000e+00> : vector<8x64xf32>
    %3 = tpu.matmul %1, %2, %cst {dimension_numbers = #tpu.dot_dimension_numbers<[1], [0], [0], [1], [0, 0, 1, 1], [], []>} : vector<8x32xf32>, vector<32x64xf32>, vector<8x64xf32> -> vector<8x64xf32>
    %4 = vector.shape_cast %3 : vector<8x64xf32> to vector<1x8x64xf32>
    %c0_4 = arith.constant 0 : index
    %c0_5 = arith.constant 0 : index
    %c0_6 = arith.constant 0 : index
    %5 = vector.load %arg7[%c0_4, %c0_5, %c0_6] : memref<1x8x64xf32, #tpu.memory_space<vmem>>, vector<1x8x64xf32>
    tpu.vector_store %arg7[%c0_4, %c0_5, %c0_6], %4 {strides = array<i32>} : memref<1x8x64xf32, #tpu.memory_space<vmem>>, vector<1x8x64xf32>,
    %c0_7 = arith.constant 0 : index
    %c0_8 = arith.constant 0 : index
    %c0_9 = arith.constant 0 : index
    %6 = vector.load %arg1[%c0_7, %c0_8, %c0_9] : memref<1x8x32xf32, #tpu.memory_space<vmem>>, vector<1x8x32xf32>
    %cst_10 = arith.constant 0.353553385 : f32
    %7 = vector.broadcast %cst_10 : f32 to vector<1x8x32xf32>
    %8 = arith.mulf %6, %7 : vector<1x8x32xf32>
    %cst_11 = arith.constant 0.000000e+00 : f32
    %9 = vector.broadcast %cst_11 : f32 to vector<1x8x32xf32>
    %c0_12 = arith.constant 0 : index
    %c0_13 = arith.constant 0 : index
    %c0_14 = arith.constant 0 : index
    %10 = vector.load %arg8[%c0_12, %c0_13, %c0_14] : memref<1x8x32xf32, #tpu.memory_space<vmem>>, vector<1x8x32xf32>
    tpu.vector_store %arg8[%c0_12, %c0_13, %c0_14], %9 {strides = array<i32>} : memref<1x8x32xf32, #tpu.memory_space<vmem>>, vector<1x8x32xf32>,
    %11 = vector.extract_strided_slice %8 {offsets = [0, 0, 0], sizes = [1, 8, 8], strides = [1, 1, 1]} : vector<1x8x32xf32> to vector<1x8x8xf32>
    %c0_15 = arith.constant 0 : index
    %c0_16 = arith.constant 0 : index
    %c0_17 = arith.constant 0 : index
    %12 = vector.load %arg7[%c0_15, %c0_16, %c0_17] : memref<1x8x64xf32, #tpu.memory_space<vmem>>, vector<1x8x8xf32>
    %c0_18 = arith.constant 0 : index
    %c0_19 = arith.constant 0 : index
    %c32 = arith.constant 32 : index
    %13 = vector.load %arg7[%c0_18, %c0_19, %c32] : memref<1x8x64xf32, #tpu.memory_space<vmem>>, vector<1x8x8xf32>
    "tpu.trace_start"() <{level = 10 : i32, message = "bqd,bkd->bqk"}> : () -> ()
    %cst_20 = arith.constant dense<0.000000e+00> : vector<1x8x8xf32>
    %14 = tpu.matmul %11, %12, %cst_20 {dimension_numbers = #tpu.dot_dimension_numbers<[2], [2], [1], [1], [0, 0, 0, 1, 1, 1], [0], [0]>} : vector<1x8x8xf32>, vector<1x8x8xf32>, vector<1x8x8xf32> -> vector<1x8x8xf32>
    "tpu.trace_stop"() : () -> ()
    %cst_21 = arith.constant dense<0xFF800000> : vector<1x8xf32>
    %15 = vector.multi_reduction <maximumf>, %14, %cst_21 [2] : vector<1x8x8xf32> to vector<1x8xf32>
    %16 = vector.shape_cast %15 : vector<1x8xf32> to vector<1x8x1xf32>
    %17 = vector.broadcast %16 : vector<1x8x1xf32> to vector<1x8x8xf32>
    %18 = arith.subf %14, %17 : vector<1x8x8xf32>
    %19 = math.exp %18 : vector<1x8x8xf32>
    %cst_22 = arith.constant dense<0.000000e+00> : vector<1x8xf32>
    %20 = vector.multi_reduction <add>, %19, %cst_22 [2] : vector<1x8x8xf32> to vector<1x8xf32>
    %21 = vector.shape_cast %20 : vector<1x8xf32> to vector<1x8x1xf32>
    "tpu.trace_start"() <{level = 10 : i32, message = "bqk,bkd->bqd"}> : () -> ()
    %cst_23 = arith.constant dense<0.000000e+00> : vector<1x8x8xf32>
    %22 = tpu.matmul %19, %13, %cst_23 {dimension_numbers = #tpu.dot_dimension_numbers<[2], [1], [1], [2], [0, 0, 0, 1, 1, 2], [0], [0]>} : vector<1x8x8xf32>, vector<1x8x8xf32>, vector<1x8x8xf32> -> vector<1x8x8xf32>
    "tpu.trace_stop"() : () -> ()
    %23 = tpu.reciprocal %21 {approx = true} : vector<1x8x1xf32> -> vector<1x8x1xf32>
    %24 = vector.broadcast %23 : vector<1x8x1xf32> to vector<1x8x8xf32>
    %25 = arith.mulf %22, %24 : vector<1x8x8xf32>
    %c0_24 = arith.constant 0 : index
    %c0_25 = arith.constant 0 : index
    %c0_26 = arith.constant 0 : index
    %26 = vector.load %arg8[%c0_24, %c0_25, %c0_26] : memref<1x8x32xf32, #tpu.memory_space<vmem>>, vector<1x8x32xf32>
    %c0_27 = arith.constant 0 : index
    %c0_28 = arith.constant 0 : index
    %c0_29 = arith.constant 0 : index
    %27 = vector.load %arg4[%c0_27, %c0_28, %c0_29] : memref<4x8x32xf32, #tpu.memory_space<vmem>>, vector<1x8x32xf32>
    %28 = vector.shape_cast %27 : vector<1x8x32xf32> to vector<8x32xf32>
    "tpu.trace_start"() <{level = 10 : i32, message = "bqd,de->bqe"}> : () -> ()
    %cst_30 = arith.constant dense<0.000000e+00> : vector<1x8x32xf32>
    %29 = tpu.matmul %25, %28, %cst_30 {dimension_numbers = #tpu.dot_dimension_numbers<[2], [0], [0, 1], [1], [0, 0, 0, 1, 1, 1], [], []>} : vector<1x8x8xf32>, vector<8x32xf32>, vector<1x8x32xf32> -> vector<1x8x32xf32>
    "tpu.trace_stop"() : () -> ()
    %30 = arith.addf %26, %29 : vector<1x8x32xf32>
    %c0_31 = arith.constant 0 : index
    %c0_32 = arith.constant 0 : index
    %c0_33 = arith.constant 0 : index
    %31 = vector.load %arg8[%c0_31, %c0_32, %c0_33] : memref<1x8x32xf32, #tpu.memory_space<vmem>>, vector<1x8x32xf32>
    tpu.vector_store %arg8[%c0_31, %c0_32, %c0_33], %30 {strides = array<i32>} : memref<1x8x32xf32, #tpu.memory_space<vmem>>, vector<1x8x32xf32>,
    %32 = vector.extract_strided_slice %8 {offsets = [0, 0, 8], sizes = [1, 8, 8], strides = [1, 1, 1]} : vector<1x8x32xf32> to vector<1x8x8xf32>
    %c0_34 = arith.constant 0 : index
    %c0_35 = arith.constant 0 : index
    %c8 = arith.constant 8 : index
    %33 = vector.load %arg7[%c0_34, %c0_35, %c8] : memref<1x8x64xf32, #tpu.memory_space<vmem>>, vector<1x8x8xf32>
    %c0_36 = arith.constant 0 : index
    %c0_37 = arith.constant 0 : index
    %c40 = arith.constant 40 : index
    %34 = vector.load %arg7[%c0_36, %c0_37, %c40] : memref<1x8x64xf32, #tpu.memory_space<vmem>>, vector<1x8x8xf32>
    "tpu.trace_start"() <{level = 10 : i32, message = "bqd,bkd->bqk"}> : () -> ()
    %cst_38 = arith.constant dense<0.000000e+00> : vector<1x8x8xf32>
    %35 = tpu.matmul %32, %33, %cst_38 {dimension_numbers = #tpu.dot_dimension_numbers<[2], [2], [1], [1], [0, 0, 0, 1, 1, 1], [0], [0]>} : vector<1x8x8xf32>, vector<1x8x8xf32>, vector<1x8x8xf32> -> vector<1x8x8xf32>
    "tpu.trace_stop"() : () -> ()
    %cst_39 = arith.constant dense<0xFF800000> : vector<1x8xf32>
    %36 = vector.multi_reduction <maximumf>, %35, %cst_39 [2] : vector<1x8x8xf32> to vector<1x8xf32>
    %37 = vector.shape_cast %36 : vector<1x8xf32> to vector<1x8x1xf32>
    %38 = vector.broadcast %37 : vector<1x8x1xf32> to vector<1x8x8xf32>
    %39 = arith.subf %35, %38 : vector<1x8x8xf32>
    %40 = math.exp %39 : vector<1x8x8xf32>
    %cst_40 = arith.constant dense<0.000000e+00> : vector<1x8xf32>
    %41 = vector.multi_reduction <add>, %40, %cst_40 [2] : vector<1x8x8xf32> to vector<1x8xf32>
    %42 = vector.shape_cast %41 : vector<1x8xf32> to vector<1x8x1xf32>
    "tpu.trace_start"() <{level = 10 : i32, message = "bqk,bkd->bqd"}> : () -> ()
    %cst_41 = arith.constant dense<0.000000e+00> : vector<1x8x8xf32>
    %43 = tpu.matmul %40, %34, %cst_41 {dimension_numbers = #tpu.dot_dimension_numbers<[2], [1], [1], [2], [0, 0, 0, 1, 1, 2], [0], [0]>} : vector<1x8x8xf32>, vector<1x8x8xf32>, vector<1x8x8xf32> -> vector<1x8x8xf32>
    "tpu.trace_stop"() : () -> ()
    %44 = tpu.reciprocal %42 {approx = true} : vector<1x8x1xf32> -> vector<1x8x1xf32>
    %45 = vector.broadcast %44 : vector<1x8x1xf32> to vector<1x8x8xf32>
    %46 = arith.mulf %43, %45 : vector<1x8x8xf32>
    %c0_42 = arith.constant 0 : index
    %c0_43 = arith.constant 0 : index
    %c0_44 = arith.constant 0 : index
    %47 = vector.load %arg8[%c0_42, %c0_43, %c0_44] : memref<1x8x32xf32, #tpu.memory_space<vmem>>, vector<1x8x32xf32>
    %c1 = arith.constant 1 : index
    %c0_45 = arith.constant 0 : index
    %c0_46 = arith.constant 0 : index
    %48 = vector.load %arg4[%c1, %c0_45, %c0_46] : memref<4x8x32xf32, #tpu.memory_space<vmem>>, vector<1x8x32xf32>
    %49 = vector.shape_cast %48 : vector<1x8x32xf32> to vector<8x32xf32>
    "tpu.trace_start"() <{level = 10 : i32, message = "bqd,de->bqe"}> : () -> ()
    %cst_47 = arith.constant dense<0.000000e+00> : vector<1x8x32xf32>
    %50 = tpu.matmul %46, %49, %cst_47 {dimension_numbers = #tpu.dot_dimension_numbers<[2], [0], [0, 1], [1], [0, 0, 0, 1, 1, 1], [], []>} : vector<1x8x8xf32>, vector<8x32xf32>, vector<1x8x32xf32> -> vector<1x8x32xf32>
    "tpu.trace_stop"() : () -> ()
    %51 = arith.addf %47, %50 : vector<1x8x32xf32>
    %c0_48 = arith.constant 0 : index
    %c0_49 = arith.constant 0 : index
    %c0_50 = arith.constant 0 : index
    %52 = vector.load %arg8[%c0_48, %c0_49, %c0_50] : memref<1x8x32xf32, #tpu.memory_space<vmem>>, vector<1x8x32xf32>
    tpu.vector_store %arg8[%c0_48, %c0_49, %c0_50], %51 {strides = array<i32>} : memref<1x8x32xf32, #tpu.memory_space<vmem>>, vector<1x8x32xf32>,
    %53 = vector.extract_strided_slice %8 {offsets = [0, 0, 16], sizes = [1, 8, 8], strides = [1, 1, 1]} : vector<1x8x32xf32> to vector<1x8x8xf32>
    %c0_51 = arith.constant 0 : index
    %c0_52 = arith.constant 0 : index
    %c16 = arith.constant 16 : index
    %54 = vector.load %arg7[%c0_51, %c0_52, %c16] : memref<1x8x64xf32, #tpu.memory_space<vmem>>, vector<1x8x8xf32>
    %c0_53 = arith.constant 0 : index
    %c0_54 = arith.constant 0 : index
    %c48 = arith.constant 48 : index
    %55 = vector.load %arg7[%c0_53, %c0_54, %c48] : memref<1x8x64xf32, #tpu.memory_space<vmem>>, vector<1x8x8xf32>
    "tpu.trace_start"() <{level = 10 : i32, message = "bqd,bkd->bqk"}> : () -> ()
    %cst_55 = arith.constant dense<0.000000e+00> : vector<1x8x8xf32>
    %56 = tpu.matmul %53, %54, %cst_55 {dimension_numbers = #tpu.dot_dimension_numbers<[2], [2], [1], [1], [0, 0, 0, 1, 1, 1], [0], [0]>} : vector<1x8x8xf32>, vector<1x8x8xf32>, vector<1x8x8xf32> -> vector<1x8x8xf32>
    "tpu.trace_stop"() : () -> ()
    %cst_56 = arith.constant dense<0xFF800000> : vector<1x8xf32>
    %57 = vector.multi_reduction <maximumf>, %56, %cst_56 [2] : vector<1x8x8xf32> to vector<1x8xf32>
    %58 = vector.shape_cast %57 : vector<1x8xf32> to vector<1x8x1xf32>
    %59 = vector.broadcast %58 : vector<1x8x1xf32> to vector<1x8x8xf32>
    %60 = arith.subf %56, %59 : vector<1x8x8xf32>
    %61 = math.exp %60 : vector<1x8x8xf32>
    %cst_57 = arith.constant dense<0.000000e+00> : vector<1x8xf32>
    %62 = vector.multi_reduction <add>, %61, %cst_57 [2] : vector<1x8x8xf32> to vector<1x8xf32>
    %63 = vector.shape_cast %62 : vector<1x8xf32> to vector<1x8x1xf32>
    "tpu.trace_start"() <{level = 10 : i32, message = "bqk,bkd->bqd"}> : () -> ()
    %cst_58 = arith.constant dense<0.000000e+00> : vector<1x8x8xf32>
    %64 = tpu.matmul %61, %55, %cst_58 {dimension_numbers = #tpu.dot_dimension_numbers<[2], [1], [1], [2], [0, 0, 0, 1, 1, 2], [0], [0]>} : vector<1x8x8xf32>, vector<1x8x8xf32>, vector<1x8x8xf32> -> vector<1x8x8xf32>
    "tpu.trace_stop"() : () -> ()
    %65 = tpu.reciprocal %63 {approx = true} : vector<1x8x1xf32> -> vector<1x8x1xf32>
    %66 = vector.broadcast %65 : vector<1x8x1xf32> to vector<1x8x8xf32>
    %67 = arith.mulf %64, %66 : vector<1x8x8xf32>
    %c0_59 = arith.constant 0 : index
    %c0_60 = arith.constant 0 : index
    %c0_61 = arith.constant 0 : index
    %68 = vector.load %arg8[%c0_59, %c0_60, %c0_61] : memref<1x8x32xf32, #tpu.memory_space<vmem>>, vector<1x8x32xf32>
    %c2 = arith.constant 2 : index
    %c0_62 = arith.constant 0 : index
    %c0_63 = arith.constant 0 : index
    %69 = vector.load %arg4[%c2, %c0_62, %c0_63] : memref<4x8x32xf32, #tpu.memory_space<vmem>>, vector<1x8x32xf32>
    %70 = vector.shape_cast %69 : vector<1x8x32xf32> to vector<8x32xf32>
    "tpu.trace_start"() <{level = 10 : i32, message = "bqd,de->bqe"}> : () -> ()
    %cst_64 = arith.constant dense<0.000000e+00> : vector<1x8x32xf32>
    %71 = tpu.matmul %67, %70, %cst_64 {dimension_numbers = #tpu.dot_dimension_numbers<[2], [0], [0, 1], [1], [0, 0, 0, 1, 1, 1], [], []>} : vector<1x8x8xf32>, vector<8x32xf32>, vector<1x8x32xf32> -> vector<1x8x32xf32>
    "tpu.trace_stop"() : () -> ()
    %72 = arith.addf %68, %71 : vector<1x8x32xf32>
    %c0_65 = arith.constant 0 : index
    %c0_66 = arith.constant 0 : index
    %c0_67 = arith.constant 0 : index
    %73 = vector.load %arg8[%c0_65, %c0_66, %c0_67] : memref<1x8x32xf32, #tpu.memory_space<vmem>>, vector<1x8x32xf32>
    tpu.vector_store %arg8[%c0_65, %c0_66, %c0_67], %72 {strides = array<i32>} : memref<1x8x32xf32, #tpu.memory_space<vmem>>, vector<1x8x32xf32>,
    %74 = vector.extract_strided_slice %8 {offsets = [0, 0, 24], sizes = [1, 8, 8], strides = [1, 1, 1]} : vector<1x8x32xf32> to vector<1x8x8xf32>
    %c0_68 = arith.constant 0 : index
    %c0_69 = arith.constant 0 : index
    %c24 = arith.constant 24 : index
    %75 = vector.load %arg7[%c0_68, %c0_69, %c24] : memref<1x8x64xf32, #tpu.memory_space<vmem>>, vector<1x8x8xf32>
    %c0_70 = arith.constant 0 : index
    %c0_71 = arith.constant 0 : index
    %c56 = arith.constant 56 : index
    %76 = vector.load %arg7[%c0_70, %c0_71, %c56] : memref<1x8x64xf32, #tpu.memory_space<vmem>>, vector<1x8x8xf32>
    "tpu.trace_start"() <{level = 10 : i32, message = "bqd,bkd->bqk"}> : () -> ()
    %cst_72 = arith.constant dense<0.000000e+00> : vector<1x8x8xf32>
    %77 = tpu.matmul %74, %75, %cst_72 {dimension_numbers = #tpu.dot_dimension_numbers<[2], [2], [1], [1], [0, 0, 0, 1, 1, 1], [0], [0]>} : vector<1x8x8xf32>, vector<1x8x8xf32>, vector<1x8x8xf32> -> vector<1x8x8xf32>
    "tpu.trace_stop"() : () -> ()
    %cst_73 = arith.constant dense<0xFF800000> : vector<1x8xf32>
    %78 = vector.multi_reduction <maximumf>, %77, %cst_73 [2] : vector<1x8x8xf32> to vector<1x8xf32>
    %79 = vector.shape_cast %78 : vector<1x8xf32> to vector<1x8x1xf32>
    %80 = vector.broadcast %79 : vector<1x8x1xf32> to vector<1x8x8xf32>
    %81 = arith.subf %77, %80 : vector<1x8x8xf32>
    %82 = math.exp %81 : vector<1x8x8xf32>
    %cst_74 = arith.constant dense<0.000000e+00> : vector<1x8xf32>
    %83 = vector.multi_reduction <add>, %82, %cst_74 [2] : vector<1x8x8xf32> to vector<1x8xf32>
    %84 = vector.shape_cast %83 : vector<1x8xf32> to vector<1x8x1xf32>
    "tpu.trace_start"() <{level = 10 : i32, message = "bqk,bkd->bqd"}> : () -> ()
    %cst_75 = arith.constant dense<0.000000e+00> : vector<1x8x8xf32>
    %85 = tpu.matmul %82, %76, %cst_75 {dimension_numbers = #tpu.dot_dimension_numbers<[2], [1], [1], [2], [0, 0, 0, 1, 1, 2], [0], [0]>} : vector<1x8x8xf32>, vector<1x8x8xf32>, vector<1x8x8xf32> -> vector<1x8x8xf32>
    "tpu.trace_stop"() : () -> ()
    %86 = tpu.reciprocal %84 {approx = true} : vector<1x8x1xf32> -> vector<1x8x1xf32>
    %87 = vector.broadcast %86 : vector<1x8x1xf32> to vector<1x8x8xf32>
    %88 = arith.mulf %85, %87 : vector<1x8x8xf32>
    %c0_76 = arith.constant 0 : index
    %c0_77 = arith.constant 0 : index
    %c0_78 = arith.constant 0 : index
    %89 = vector.load %arg8[%c0_76, %c0_77, %c0_78] : memref<1x8x32xf32, #tpu.memory_space<vmem>>, vector<1x8x32xf32>
    %c3 = arith.constant 3 : index
    %c0_79 = arith.constant 0 : index
    %c0_80 = arith.constant 0 : index
    %90 = vector.load %arg4[%c3, %c0_79, %c0_80] : memref<4x8x32xf32, #tpu.memory_space<vmem>>, vector<1x8x32xf32>
    %91 = vector.shape_cast %90 : vector<1x8x32xf32> to vector<8x32xf32>
    "tpu.trace_start"() <{level = 10 : i32, message = "bqd,de->bqe"}> : () -> ()
    %cst_81 = arith.constant dense<0.000000e+00> : vector<1x8x32xf32>
    %92 = tpu.matmul %88, %91, %cst_81 {dimension_numbers = #tpu.dot_dimension_numbers<[2], [0], [0, 1], [1], [0, 0, 0, 1, 1, 1], [], []>} : vector<1x8x8xf32>, vector<8x32xf32>, vector<1x8x32xf32> -> vector<1x8x32xf32>
    "tpu.trace_stop"() : () -> ()
    %93 = arith.addf %89, %92 : vector<1x8x32xf32>
    %c0_82 = arith.constant 0 : index
    %c0_83 = arith.constant 0 : index
    %c0_84 = arith.constant 0 : index
    %94 = vector.load %arg8[%c0_82, %c0_83, %c0_84] : memref<1x8x32xf32, #tpu.memory_space<vmem>>, vector<1x8x32xf32>
    tpu.vector_store %arg8[%c0_82, %c0_83, %c0_84], %93 {strides = array<i32>} : memref<1x8x32xf32, #tpu.memory_space<vmem>>, vector<1x8x32xf32>,
    %c0_85 = arith.constant 0 : index
    %c0_86 = arith.constant 0 : index
    %c0_87 = arith.constant 0 : index
    %95 = vector.load %arg8[%c0_85, %c0_86, %c0_87] : memref<1x8x32xf32, #tpu.memory_space<vmem>>, vector<1x8x32xf32>
    %c0_88 = arith.constant 0 : index
    %c0_89 = arith.constant 0 : index
    %96 = vector.load %arg5[%c0_88, %c0_89] : memref<1x32xf32, #tpu.memory_space<vmem>>, vector<1x32xf32>
    %97 = vector.shape_cast %96 : vector<1x32xf32> to vector<1x1x32xf32>
    %98 = vector.broadcast %97 : vector<1x1x32xf32> to vector<1x8x32xf32>
    %99 = arith.addf %95, %98 : vector<1x8x32xf32>
    %c0_90 = arith.constant 0 : index
    %c0_91 = arith.constant 0 : index
    %c0_92 = arith.constant 0 : index
    %100 = vector.load %arg6[%c0_90, %c0_91, %c0_92] : memref<1x8x32xf32, #tpu.memory_space<vmem>>, vector<1x8x32xf32>
    tpu.vector_store %arg6[%c0_90, %c0_91, %c0_92], %99 {strides = array<i32>} : memref<1x8x32xf32, #tpu.memory_space<vmem>>, vector<1x8x32xf32>,
    return
  }
  func.func @transform_0(%arg0: i32) -> (i32, i32, i32) {
    %c0_i32 = arith.constant 0 : i32
    %c0_i32_0 = arith.constant 0 : i32
    %c0_i32_1 = arith.constant 0 : i32
    return %arg0, %c0_i32, %c0_i32_0 : i32, i32, i32
  }
  func.func @transform_1(%arg0: i32) -> (i32, i32, i32) {
    %c0_i32 = arith.constant 0 : i32
    %c0_i32_0 = arith.constant 0 : i32
    %c0_i32_1 = arith.constant 0 : i32
    return %arg0, %c0_i32, %c0_i32_0 : i32, i32, i32
  }
  func.func @transform_2(%arg0: i32) -> (i32, i32) {
    %c0_i32 = arith.constant 0 : i32
    %c0_i32_0 = arith.constant 0 : i32
    %c0_i32_1 = arith.constant 0 : i32
    return %c0_i32, %c0_i32_0 : i32, i32
  }
  func.func @transform_3(%arg0: i32) -> (i32, i32, i32) {
    %c0_i32 = arith.constant 0 : i32
    %c0_i32_0 = arith.constant 0 : i32
    %c0_i32_1 = arith.constant 0 : i32
    %c0_i32_2 = arith.constant 0 : i32
    return %c0_i32, %c0_i32_0, %c0_i32_1 : i32, i32, i32
  }
  func.func @transform_4(%arg0: i32) -> (i32, i32) {
    %c0_i32 = arith.constant 0 : i32
    %c0_i32_0 = arith.constant 0 : i32
    %c0_i32_1 = arith.constant 0 : i32
    return %c0_i32, %c0_i32_0 : i32, i32
  }
  func.func @transform_5(%arg0: i32) -> (i32, i32, i32) {
    %c0_i32 = arith.constant 0 : i32
    %c0_i32_0 = arith.constant 0 : i32
    %c0_i32_1 = arith.constant 0 : i32
    return %arg0, %c0_i32, %c0_i32_0 : i32, i32, i32
  }
}

</mosaic_0001>

<llo_original>
// kernel: tpu_custom_call.1
$region0: #{tpu_custom_call.1}
  #allocation0 [shape = 'u32[]', space=smem, size = 0x4, offset = 0x4, fixed_abs, tag = 'smem constant byte address 0x4 - core index']
  #allocation1 [shape = 'u32[144,128]{1,0:T(1,128)}', space=vmem, size = 0x12000, scoped, tag = 'internal scratch']
  #allocation2 [shape = 'f32[1,8,64]{2,1,0:T(8,128)}', space=vmem, size = 0x1000, scoped, tag = 'scratch operand']
  #allocation3 [shape = 'f32[1,8,32]{2,1,0:T(8,128)}', space=vmem, size = 0x1000, scoped, tag = 'scratch operand']
  %s0 = inlined_call_operand.hbm [shape: f32[2,8,32], index: 0, kind: input, shape index: {}]
  %s1 = inlined_call_operand.hbm [shape: f32[2,8,32], index: 1, kind: input, shape index: {}]
  %s2 = inlined_call_operand.hbm [shape: f32[32,64], index: 2, kind: input, shape index: {}]
  %s3 = inlined_call_operand.hbm [shape: f32[4,8,32], index: 3, kind: input, shape index: {}]
  %s4 = inlined_call_operand.vmem [shape: f32[1,32], index: 4, kind: input, shape index: {}]
  %s5 = inlined_call_operand.hbm [shape: f32[2,8,32], index: 5, kind: output, shape index: {}]
  %s6 = sld [smem:[#allocation0]]
  $region69: #{tpu_custom_call.1} parent=0
    _
  %s8 = ssub.s32 1, %s6
  %s9 = scalar_select 0, %s8, %s6
  $region1: #{tpu_custom_call.1} parent=0
    #allocation4 [shape = 'u8[8192]{0}', space=vmem, size = 0x2000, scoped, tag = 'input window, operand 0']
    #allocation5 [shape = 's32[2]{0}', space=sflag, size = 0x8, scoped, tag = 'scoped memory for tpu_custom_call.1']
    #allocation6 [shape = 's32[2]{0}', space=sflag, size = 0x8, scoped, tag = 'scoped memory for tpu_custom_call.1']
    #allocation7 [shape = 'u8[8192]{0}', space=vmem, size = 0x2000, scoped, tag = 'input window, operand 1']
    #allocation8 [shape = 's32[2]{0}', space=sflag, size = 0x8, scoped, tag = 'scoped memory for tpu_custom_call.1']
    #allocation9 [shape = 'u8[16384]{0}', space=vmem, size = 0x4000, scoped, tag = 'input window, operand 2, single buffered']
    #allocation10 [shape = 'u8[16384]{0}', space=vmem, size = 0x4000, scoped, tag = 'input window, operand 3, single buffered']
    #allocation11 [shape = 's32[1]{0}', space=sflag, size = 0x4, scoped, tag = 'scoped memory for tpu_custom_call.1']
    #allocation12 [shape = 'u8[8192]{0}', space=vmem, size = 0x2000, scoped, tag = 'output window, operand 0']
    %10 = vsyncpa [#allocation5], 0
    %s11 = scalar_lea.sflag [#allocation5], 1
    %12 = vsyncpa %s11, 0
    %13 = vsyncpa [#allocation8], 0
    %s14 = scalar_lea.sflag [#allocation8], 1
    %15 = vsyncpa %s14, 0
    %16 = vsyncpa [#allocation11], 0
    %17 = vsyncpa [#allocation6], 0
    %s18 = scalar_lea.sflag [#allocation6], 1
    %19 = vsyncpa %s18, 0
    loop: start=0, step=1, limit=4
    $region2: #{tpu_custom_call.1} parent=1 // loop_pre_header
      _
    $region3: #{tpu_custom_call.1} parent=1 // loop_header
      %s21 = sphi 0, %s25
      %p22 = scmp.ge.s32.totalorder %s21, 4
      %s31 = sphi 0, %s33
      %s34 = sphi 0, %s31
      %s35 = sphi 0, %s34
      %s51 = sphi 0, %s35
      %s57 = sphi 0, %s59
      %s60 = sphi 0, %s57
      %s61 = sphi 0, %s60
      %s77 = sphi 0, %s61
      %s81 = sphi 0, %s81
      %s83 = sphi 0, %s81
      %s84 = sphi 0, %s83
      %s98 = sphi 0, %s84
      %s102 = sphi 0, %s102
      %s104 = sphi 0, %s102
      %s105 = sphi 0, %s104
      %s119 = sphi 0, %s105
      %s123 = sphi 0, %s123
      %s125 = sphi 0, %s123
      %s126 = sphi 0, %s125
      %s140 = sphi 0, %s126
      %s146 = sphi 0, %s148
      %s149 = sphi 0, %s146
      %s150 = sphi 0, %s149
      %s166 = sphi 0, %s150
    $region4: #{tpu_custom_call.1} parent=1 // loop_header_branch
      %24 = sbr.rel (%p22) target = $region8
    $region5: #{tpu_custom_call.1} parent=1 // loop_body
      %s26 = ssub.s32 %s21, 1
      %s27 = ssub.s32 %s21, 2
      %s28 = sadd.s32 %s21, 1
      %s29 = ssub.s32 %s21, %s28
      %p30 = scmp.eq.s32.totalorder %s29, 0
      %s32 = sadd.s32 %s31, 1
      %s33 = scalar_select %p30, %s31, %s32
      %p36 = pneg %p30
      %p37 = scmp.eq.s32.totalorder %s21, 1
      %p38 = por %p36, %p37
      %p39 = scmp.ne.s32.totalorder %s31, %s34
      %p40 = scmp.eq.s32.totalorder %s21, 0
      %p41 = por %p39, %p40
      %p42 = scmp.ne.s32.totalorder %s31, %s34
      %p43 = scmp.eq.s32.totalorder %s26, 1
      %p44 = por %p42, %p43
      %p45 = scmp.ne.s32.totalorder %s34, %s35
      %p46 = scmp.eq.s32.totalorder %s26, 0
      %p47 = por %p45, %p46
      %p48 = scmp.ne.s32.totalorder %s34, %s35
      %p49 = scmp.eq.s32.totalorder %s27, 1
      %p50 = por %p48, %p49
      %p52 = scmp.ne.s32.totalorder %s35, %s51
      %p53 = scmp.eq.s32.totalorder %s27, 0
      %p54 = por %p52, %p53
      %s55 = ssub.s32 %s21, %s28
      %p56 = scmp.eq.s32.totalorder %s55, 0
      %s58 = sadd.s32 %s57, 1
      %s59 = scalar_select %p56, %s57, %s58
      %p62 = pneg %p56
      %p63 = scmp.eq.s32.totalorder %s21, 1
      %p64 = por %p62, %p63
      %p65 = scmp.ne.s32.totalorder %s57, %s60
      %p66 = scmp.eq.s32.totalorder %s21, 0
      %p67 = por %p65, %p66
      %p68 = scmp.ne.s32.totalorder %s57, %s60
      %p69 = scmp.eq.s32.totalorder %s26, 1
      %p70 = por %p68, %p69
      %p71 = scmp.ne.s32.totalorder %s60, %s61
      %p72 = scmp.eq.s32.totalorder %s26, 0
      %p73 = por %p71, %p72
      %p74 = scmp.ne.s32.totalorder %s60, %s61
      %p75 = scmp.eq.s32.totalorder %s27, 1
      %p76 = por %p74, %p75
      %p78 = scmp.ne.s32.totalorder %s61, %s77
      %p79 = scmp.eq.s32.totalorder %s27, 0
      %p80 = por %p78, %p79
      %s82 = sadd.s32 %s81, 1
      %p85 = scmp.eq.s32.totalorder %s21, 1
      %p86 = scmp.ne.s32.totalorder %s81, %s83
      %p87 = scmp.eq.s32.totalorder %s21, 0
      %p88 = por %p86, %p87
      %p89 = scmp.ne.s32.totalorder %s81, %s83
      %p90 = scmp.eq.s32.totalorder %s26, 1
      %p91 = por %p89, %p90
      %p92 = scmp.ne.s32.totalorder %s83, %s84
      %p93 = scmp.eq.s32.totalorder %s26, 0
      %p94 = por %p92, %p93
      %p95 = scmp.ne.s32.totalorder %s83, %s84
      %p96 = scmp.eq.s32.totalorder %s27, 1
      %p97 = por %p95, %p96
      %p99 = scmp.ne.s32.totalorder %s84, %s98
      %p100 = scmp.eq.s32.totalorder %s27, 0
      %p101 = por %p99, %p100
      %s103 = sadd.s32 %s102, 1
      %p106 = scmp.eq.s32.totalorder %s21, 1
      %p107 = scmp.ne.s32.totalorder %s102, %s104
      %p108 = scmp.eq.s32.totalorder %s21, 0
      %p109 = por %p107, %p108
      %p110 = scmp.ne.s32.totalorder %s102, %s104
      %p111 = scmp.eq.s32.totalorder %s26, 1
      %p112 = por %p110, %p111
      %p113 = scmp.ne.s32.totalorder %s104, %s105
      %p114 = scmp.eq.s32.totalorder %s26, 0
      %p115 = por %p113, %p114
      %p116 = scmp.ne.s32.totalorder %s104, %s105
      %p117 = scmp.eq.s32.totalorder %s27, 1
      %p118 = por %p116, %p117
      %p120 = scmp.ne.s32.totalorder %s105, %s119
      %p121 = scmp.eq.s32.totalorder %s27, 0
      %p122 = por %p120, %p121
      %s124 = sadd.s32 %s123, 1
      %p127 = scmp.eq.s32.totalorder %s21, 1
      %p128 = scmp.ne.s32.totalorder %s123, %s125
      %p129 = scmp.eq.s32.totalorder %s21, 0
      %p130 = por %p128, %p129
      %p131 = scmp.ne.s32.totalorder %s123, %s125
      %p132 = scmp.eq.s32.totalorder %s26, 1
      %p133 = por %p131, %p132
      %p134 = scmp.ne.s32.totalorder %s125, %s126
      %p135 = scmp.eq.s32.totalorder %s26, 0
      %p136 = por %p134, %p135
      %p137 = scmp.ne.s32.totalorder %s125, %s126
      %p138 = scmp.eq.s32.totalorder %s27, 1
      %p139 = por %p137, %p138
      %p141 = scmp.ne.s32.totalorder %s126, %s140
      %p142 = scmp.eq.s32.totalorder %s27, 0
      %p143 = por %p141, %p142
      %s144 = ssub.s32 %s21, %s28
      %p145 = scmp.eq.s32.totalorder %s144, 0
      %s147 = sadd.s32 %s146, 1
      %s148 = scalar_select %p145, %s146, %s147
      %p151 = pneg %p145
      %p152 = scmp.eq.s32.totalorder %s21, 1
      %p153 = por %p151, %p152
      %p154 = scmp.ne.s32.totalorder %s146, %s149
      %p155 = scmp.eq.s32.totalorder %s21, 0
      %p156 = por %p154, %p155
      %p157 = scmp.ne.s32.totalorder %s146, %s149
      %p158 = scmp.eq.s32.totalorder %s26, 1
      %p159 = por %p157, %p158
      %p160 = scmp.ne.s32.totalorder %s149, %s150
      %p161 = scmp.eq.s32.totalorder %s26, 0
      %p162 = por %p160, %p161
      %p163 = scmp.ne.s32.totalorder %s149, %s150
      %p164 = scmp.eq.s32.totalorder %s27, 1
      %p165 = por %p163, %p164
      %p167 = scmp.ne.s32.totalorder %s150, %s166
      %p168 = scmp.eq.s32.totalorder %s27, 0
      %p169 = por %p167, %p168
      %p170 = scmp.le.s32.totalorder 1, %s21
      %p171 = scmp.lt.s32.totalorder %s21, 3
      %p172 = pnand %p170, %p171
      %p173 = pneg %p172
      // Predicated region
      $region9: #{tpu_custom_call.1} parent=5 // pred_check
        _
      $region10: #{tpu_custom_call.1} parent=5 // pred_check_branch
        %175 = sbr.rel (%p172) target = $region12
      $region11: #{tpu_custom_call.1} parent=5 // pred_region
        %s176 = ssub.s32 %s21, 1
        // Predicated region
        $region13: #{tpu_custom_call.1} parent=11 // pred_check
          %p177 = pneg %p94
        $region14: #{tpu_custom_call.1} parent=11 // pred_check_branch
          %179 = sbr.rel (%p177) target = $region16
        $region15: #{tpu_custom_call.1} parent=11 // pred_region
          %s181 = ssub.s32 512, 512
          %182 = vsyncadd [#allocation8], %s181
          %s183 = sshll.u32 [#allocation9], 4
          %s184 = int_to_ptr.vmem [resolvable:$true] %s183
          %189 = dma.hbm_to_vmem [thread:$0]  %s2, 512, %s184, [#allocation8], 128, 128, 8
        $region16: #{tpu_custom_call.1} parent=11 // pred_fallthru
          _
        // Predicated region
        $region17: #{tpu_custom_call.1} parent=11 // pred_check
          %p190 = pneg %p115
        $region18: #{tpu_custom_call.1} parent=11 // pred_check_branch
          %192 = sbr.rel (%p190) target = $region20
        $region19: #{tpu_custom_call.1} parent=11 // pred_region
          %s194 = ssub.s32 512, 512
          %195 = vsyncadd [#allocation11], %s194
          %s196 = sshll.u32 [#allocation10], 4
          %s197 = int_to_ptr.vmem [resolvable:$true] %s196
          %202 = dma.hbm_to_vmem [thread:$0]  %s3, 512, %s197, [#allocation11], 128, 128, 8
        $region20: #{tpu_custom_call.1} parent=11 // pred_fallthru
          _
        // Predicated region
        $region21: #{tpu_custom_call.1} parent=11 // pred_check
          %p203 = pneg %p136
        $region22: #{tpu_custom_call.1} parent=11 // pred_check_branch
          %205 = sbr.rel (%p203) target = $region24
        $region23: #{tpu_custom_call.1} parent=11 // pred_region
          _
        $region24: #{tpu_custom_call.1} parent=11 // pred_fallthru
          _
      $region12: #{tpu_custom_call.1} parent=5 // pred_fallthru
        _
      %p206 = scmp.lt.s32.totalorder %s21, 2
      // Predicated region
      $region25: #{tpu_custom_call.1} parent=5 // pred_check
        %p207 = pneg %p206
      $region26: #{tpu_custom_call.1} parent=5 // pred_check_branch
        %209 = sbr.rel (%p207) target = $region28
      $region27: #{tpu_custom_call.1} parent=5 // pred_region
        // Predicated region
        $region29: #{tpu_custom_call.1} parent=27 // pred_check
          %p210 = pneg %p41
        $region30: #{tpu_custom_call.1} parent=27 // pred_check_branch
          %212 = sbr.rel (%p210) target = $region32
        $region31: #{tpu_custom_call.1} parent=27 // pred_region
          %s213 = sand.u32 %s31, 1
          %s214 = scalar_lea.sflag [#allocation5], %s213
          %s215 = sand.u32 %s31, 1
          %s216 = smul.addr %s215, 8
          %s217 = scalar_lea.vmem [#allocation4], %s216
          %s219 = ssub.s32 128, 128
          %220 = vsyncadd %s214, %s219
          %s221 = smul.addr %s21, 128
          %s222 = scalar_lea.hbm %s0, %s221
          %s224 = sshll.u32 %s217, 4
          %s225 = int_to_ptr.vmem [resolvable:$true] %s224
          %227 = dma.hbm_to_vmem [thread:$0]  %s222, 128, %s225, %s214
        $region32: #{tpu_custom_call.1} parent=27 // pred_fallthru
          _
        // Predicated region
        $region33: #{tpu_custom_call.1} parent=27 // pred_check
          %p228 = pneg %p67
        $region34: #{tpu_custom_call.1} parent=27 // pred_check_branch
          %230 = sbr.rel (%p228) target = $region36
        $region35: #{tpu_custom_call.1} parent=27 // pred_region
          %s231 = sand.u32 %s21, 1
          %s232 = scalar_lea.sflag [#allocation8], %s231
          %s233 = sand.u32 %s57, 1
          %s234 = smul.addr %s233, 8
          %s235 = scalar_lea.vmem [#allocation7], %s234
          %s237 = ssub.s32 128, 128
          %238 = vsyncadd %s232, %s237
          %s239 = smul.addr %s21, 128
          %s240 = scalar_lea.hbm %s1, %s239
          %s242 = sshll.u32 %s235, 4
          %s243 = int_to_ptr.vmem [resolvable:$true] %s242
          %245 = dma.hbm_to_vmem [thread:$0]  %s240, 128, %s243, %s232
        $region36: #{tpu_custom_call.1} parent=27 // pred_fallthru
          _
      $region28: #{tpu_custom_call.1} parent=5 // pred_fallthru
        _
      %p246 = scmp.le.s32.totalorder 1, %s21
      %p247 = scmp.lt.s32.totalorder %s21, 3
      %p248 = pnand %p246, %p247
      %p249 = pneg %p248
      // Predicated region
      $region37: #{tpu_custom_call.1} parent=5 // pred_check
        _
      $region38: #{tpu_custom_call.1} parent=5 // pred_check_branch
        %251 = sbr.rel (%p248) target = $region40
      $region39: #{tpu_custom_call.1} parent=5 // pred_region
        %s252 = ssub.s32 %s21, 1
        %s253 = sand.u32 %s34, 1
        %s254 = scalar_lea.sflag [#allocation5], %s253
        %s255 = sand.u32 %s34, 1
        %s256 = smul.addr %s255, 8
        %s257 = scalar_lea.vmem [#allocation4], %s256
        // Predicated region
        $region41: #{tpu_custom_call.1} parent=39 // pred_check
          %p258 = pneg %p47
        $region42: #{tpu_custom_call.1} parent=39 // pred_check_branch
          %260 = sbr.rel (%p258) target = $region44
        $region43: #{tpu_custom_call.1} parent=39 // pred_region
          %261 = dma.done %s254, 128
        $region44: #{tpu_custom_call.1} parent=39 // pred_fallthru
          _
        %s262 = sand.u32 %s26, 1
        %s263 = scalar_lea.sflag [#allocation8], %s262
        %s264 = sand.u32 %s60, 1
        %s265 = smul.addr %s264, 8
        %s266 = scalar_lea.vmem [#allocation7], %s265
        // Predicated region
        $region45: #{tpu_custom_call.1} parent=39 // pred_check
          %p267 = pneg %p73
        $region46: #{tpu_custom_call.1} parent=39 // pred_check_branch
          %269 = sbr.rel (%p267) target = $region48
        $region47: #{tpu_custom_call.1} parent=39 // pred_region
          %270 = dma.done %s263, 128
        $region48: #{tpu_custom_call.1} parent=39 // pred_fallthru
          _
        // Predicated region
        $region49: #{tpu_custom_call.1} parent=39 // pred_check
          %p271 = pneg %p94
        $region50: #{tpu_custom_call.1} parent=39 // pred_check_branch
          %273 = sbr.rel (%p271) target = $region52
        $region51: #{tpu_custom_call.1} parent=39 // pred_region
          %274 = dma.done [#allocation8], 512
        $region52: #{tpu_custom_call.1} parent=39 // pred_fallthru
          _
        // Predicated region
        $region53: #{tpu_custom_call.1} parent=39 // pred_check
          %p275 = pneg %p115
        $region54: #{tpu_custom_call.1} parent=39 // pred_check_branch
          %277 = sbr.rel (%p275) target = $region56
        $region55: #{tpu_custom_call.1} parent=39 // pred_region
          %278 = dma.done [#allocation11], 512
        $region56: #{tpu_custom_call.1} parent=39 // pred_fallthru
          _
        %s279 = sand.u32 %s34, 1
        %s280 = scalar_lea.sflag [#allocation5], %s279
        %s281 = sand.u32 %s34, 1
        %s282 = smul.addr %s281, 8
        %s283 = scalar_lea.vmem [#allocation4], %s282
        %p284 = pneg %p47
        %p285 = pneg %p44
        %s286 = sand.u32 %s26, 1
        %s287 = scalar_lea.sflag [#allocation8], %s286
        %s288 = sand.u32 %s60, 1
        %s289 = smul.addr %s288, 8
        %s290 = scalar_lea.vmem [#allocation7], %s289
        %p291 = pneg %p73
        %p292 = pneg %p70
        %p293 = pneg %p94
        %p294 = pneg %p91
        %p295 = pneg %p115
        %p296 = pneg %p112
        %p297 = pneg %p136
        %p298 = pneg %p133
        %p299 = pneg %p162
        %p300 = pneg %p159
        %s301 = sand.u32 %s149, 1
        %s302 = scalar_lea.sflag [#allocation6], %s301
        %s303 = sand.u32 %s149, 1
        %s304 = smul.addr %s303, 8
        %s305 = scalar_lea.vmem [#allocation12], %s304
        %v306 = vld [vmem:[%s266] sm:$0xff]
        %v307 = vld [vmem:[#allocation9] sm:$0xff]
        %v308 = vld [vmem:[#allocation9 + $0x8] sm:$0xff]
        %v309 = vld [vmem:[#allocation9 + $0x10] sm:$0xff]
        %v310 = vld [vmem:[#allocation9 + $0x18] sm:$0xff]
        %vm311 = vcmask 261120
        %v313 = vsel %vm311, %v306, 0
        %315 = vmatprep.subr.mxu0 0.0
        %316 = vmatpush1.msra.mxu0 %v307
        %317 = vmatprep.subr.mxu0 0.0
        %318 = vmatpush1.msra.mxu0 %v308
        %319 = vmatprep.subr.mxu0 0.0
        %320 = vmatpush1.msra.mxu0 %v309
        %321 = vmatprep.subr.mxu0 0.0
        %322 = vmatpush1.msra.mxu0 %v310
        %323 = vmatprep.subr.mxu0 0.0
        %324 = vmatpush1.msra.mxu0 0.0
        %325 = vmatprep.subr.mxu0 0.0
        %326 = vmatpush1.msra.mxu0 0.0
        %327 = vmatprep.subr.mxu0 0.0
        %328 = vmatpush1.msra.mxu0 0.0
        %329 = vmatprep.subr.mxu0 0.0
        %330 = vmatpush1.msra.mxu0 0.0
        %331 = vmatprep.subr.mxu0 0.0
        %332 = vmatpush1.msra.mxu0 0.0
        %333 = vmatprep.subr.mxu0 0.0
        %334 = vmatpush1.msra.mxu0 0.0
        %335 = vmatprep.subr.mxu0 0.0
        %336 = vmatpush1.msra.mxu0 0.0
        %337 = vmatprep.subr.mxu0 0.0
        %338 = vmatpush1.msra.mxu0 0.0
        %339 = vmatprep.subr.mxu0 0.0
        %340 = vmatpush1.msra.mxu0 0.0
        %341 = vmatprep.subr.mxu0 0.0
        %342 = vmatpush1.msra.mxu0 0.0
        %343 = vmatprep.subr.mxu0 0.0
        %344 = vmatpush1.msra.mxu0 0.0
        %345 = vmatprep.subr.mxu0 0.0
        %346 = vmatpush1.msra.mxu0 0.0
        %347 = vmatprep.subr.mxu0 0.0
        %348 = vmatpush1.msra.mxu0 0.0
        %349 = vmatprep.subr.mxu0 0.0
        %350 = vmatpush1.msra.mxu0 0.0
        %351 = vmatprep.subr.mxu0 0.0
        %352 = vmatpush1.msra.mxu0 0.0
        %353 = vmatprep.subr.mxu0 0.0
        %354 = vmatpush1.msra.mxu0 0.0
        %355 = vmatprep.subr.mxu0 0.0
        %356 = vmatpush1.msra.mxu0 0.0
        %357 = vmatprep.subr.mxu0 0.0
        %358 = vmatpush1.msra.mxu0 0.0
        %359 = vmatprep.subr.mxu0 0.0
        %360 = vmatpush1.msra.mxu0 0.0
        %361 = vmatprep.subr.mxu0 0.0
        %362 = vmatpush1.msra.mxu0 0.0
        %363 = vmatprep.subr.mxu0 0.0
        %364 = vmatpush1.msra.mxu0 0.0
        %365 = vmatprep.subr.mxu0 0.0
        %366 = vmatpush1.msra.mxu0 0.0
        %367 = vmatprep.subr.mxu0 0.0
        %368 = vmatpush1.msra.mxu0 0.0
        %369 = vmatprep.subr.mxu0 0.0
        %370 = vmatpush1.msra.mxu0 0.0
        %371 = vmatprep.subr.mxu0 0.0
        %372 = vmatpush1.msra.mxu0 0.0
        %373 = vmatprep.subr.mxu0 0.0
        %374 = vmatpush1.msra.mxu0 0.0
        %375 = vmatprep.subr.mxu0 0.0
        %376 = vmatpush1.msra.mxu0 0.0
        %377 = vmatprep.subr.mxu0 0.0
        %378 = vmatpush1.msra.mxu0 0.0
        %379 = vmatprep.mubr.f32.mxu0 0.0
        %380 = vmatmul.mubr.f32.gmra.mrb[0].mxu0 %v313
        %v381 = vpop.f32.mrb[0].mxu0
        %v382 = vadd.f32 0.0, %v381
        %v383 = vpop.f32.mrb[0].mxu0
        %384 = vdwg.mxu0
        %vm385 = vcmask 523264
        %386 = vst.msk [vmem:[#allocation2] sm:$0xff] %vm385, %v382
        %v387 = vld [vmem:[%s257] sm:$0xff]
        %v388 = vmul.f32 %v387, 0.35355338
        %389 = vst.msk [vmem:[#allocation3] sm:$0xff] %vm311, 0.0
        %v390 = vld [vmem:[#allocation2] sm:$0xff]
        %vm391 = vcmask 64512
        %v393 = vsel %vm391, %v388, 0
        %v396 = vsel %vm391, %v390, 0
        %398 = vmatprep.subr.mxu0 0.0
        %399 = vmatpush1.xpose.msra.mxu0 %v396
        %400 = vmatprep.subr.mxu0 0.0
        %401 = vmatpush1.xpose.msra.mxu0 0.0
        %402 = vmatprep.subr.mxu0 0.0
        %403 = vmatpush1.xpose.msra.mxu0 0.0
        %404 = vmatprep.subr.mxu0 0.0
        %405 = vmatpush1.xpose.msra.mxu0 0.0
        %406 = vmatprep.subr.mxu0 0.0
        %407 = vmatpush1.xpose.msra.mxu0 0.0
        %408 = vmatprep.subr.mxu0 0.0
        %409 = vmatpush1.xpose.msra.mxu0 0.0
        %410 = vmatprep.subr.mxu0 0.0
        %411 = vmatpush1.xpose.msra.mxu0 0.0
        %412 = vmatprep.subr.mxu0 0.0
        %413 = vmatpush1.xpose.msra.mxu0 0.0
        %414 = vmatprep.subr.mxu0 0.0
        %415 = vmatpush1.xpose.msra.mxu0 0.0
        %416 = vmatprep.subr.mxu0 0.0
        %417 = vmatpush1.xpose.msra.mxu0 0.0
        %418 = vmatprep.subr.mxu0 0.0
        %419 = vmatpush1.xpose.msra.mxu0 0.0
        %420 = vmatprep.subr.mxu0 0.0
        %421 = vmatpush1.xpose.msra.mxu0 0.0
        %422 = vmatprep.subr.mxu0 0.0
        %423 = vmatpush1.xpose.msra.mxu0 0.0
        %424 = vmatprep.subr.mxu0 0.0
        %425 = vmatpush1.xpose.msra.mxu0 0.0
        %426 = vmatprep.subr.mxu0 0.0
        %427 = vmatpush1.xpose.msra.mxu0 0.0
        %428 = vmatprep.subr.mxu0 0.0
        %429 = vmatpush1.xpose.msra.mxu0 0.0
        %430 = vmatprep.subr.mxu0 0.0
        %431 = vmatpush1.xpose.msra.mxu0 0.0
        %432 = vmatprep.subr.mxu0 0.0
        %433 = vmatpush1.xpose.msra.mxu0 0.0
        %434 = vmatprep.subr.mxu0 0.0
        %435 = vmatpush1.xpose.msra.mxu0 0.0
        %436 = vmatprep.subr.mxu0 0.0
        %437 = vmatpush1.xpose.msra.mxu0 0.0
        %438 = vmatprep.subr.mxu0 0.0
        %439 = vmatpush1.xpose.msra.mxu0 0.0
        %440 = vmatprep.subr.mxu0 0.0
        %441 = vmatpush1.xpose.msra.mxu0 0.0
        %442 = vmatprep.subr.mxu0 0.0
        %443 = vmatpush1.xpose.msra.mxu0 0.0
        %444 = vmatprep.subr.mxu0 0.0
        %445 = vmatpush1.xpose.msra.mxu0 0.0
        %446 = vmatprep.subr.mxu0 0.0
        %447 = vmatpush1.xpose.msra.mxu0 0.0
        %448 = vmatprep.subr.mxu0 0.0
        %449 = vmatpush1.xpose.msra.mxu0 0.0
        %450 = vmatprep.subr.mxu0 0.0
        %451 = vmatpush1.xpose.msra.mxu0 0.0
        %452 = vmatprep.subr.mxu0 0.0
        %453 = vmatpush1.xpose.msra.mxu0 0.0
        %454 = vmatprep.subr.mxu0 0.0
        %455 = vmatpush1.xpose.msra.mxu0 0.0
        %456 = vmatprep.subr.mxu0 0.0
        %457 = vmatpush1.xpose.msra.mxu0 0.0
        %458 = vmatprep.subr.mxu0 0.0
        %459 = vmatpush1.xpose.msra.mxu0 0.0
        %460 = vmatprep.subr.mxu0 0.0
        %461 = vmatpush1.xpose.msra.mxu0 0.0
        %462 = vmatprep.mubr.f32.mxu0 0.0
        %463 = vmatmul.mubr.f32.gmra.mrb[0].mxu0 %v393
        %v464 = vpop.f32.mrb[0].mxu0
        %v465 = vadd.f32 0.0, %v464
        %v466 = vpop.f32.mrb[0].mxu0
        %467 = vdwg.mxu0
        %v468 = vsel %vm391, %v465, -inf
        %469 = vmax.xlane.f32.xlu0 %v468
        %v470 = vpop.xlane.xlu0 %469
        %v471 = vsub.f32 %v465, %v470
        %v472 = vmul.f32 %v471, 1.442695
        %v473 = vpow.pop %v472
        %v474 = vsel %vm391, %v473, 0.0
        %475 = vadd.xlane.f32.xlu0 %v474
        %v476 = vpop.xlane.xlu0 %475
        %477 = vrot.lane.b32.xlu0 %v390, 96
        %v478 = vpop.permute.xlu0 %477
        %v481 = vsel %vm391, %v473, 0
        %483 = vmatprep.subr.mxu0 0.0
        %484 = vmatpush1.msra.mxu0 %v478
        %485 = vmatprep.subr.mxu0 0.0
        %486 = vmatpush1.msra.mxu0 0.0
        %487 = vmatprep.subr.mxu0 0.0
        %488 = vmatpush1.msra.mxu0 0.0
        %489 = vmatprep.subr.mxu0 0.0
        %490 = vmatpush1.msra.mxu0 0.0
        %491 = vmatprep.subr.mxu0 0.0
        %492 = vmatpush1.msra.mxu0 0.0
        %493 = vmatprep.subr.mxu0 0.0
        %494 = vmatpush1.msra.mxu0 0.0
        %495 = vmatprep.subr.mxu0 0.0
        %496 = vmatpush1.msra.mxu0 0.0
        %497 = vmatprep.subr.mxu0 0.0
        %498 = vmatpush1.msra.mxu0 0.0
        %499 = vmatprep.subr.mxu0 0.0
        %500 = vmatpush1.msra.mxu0 0.0
        %501 = vmatprep.subr.mxu0 0.0
        %502 = vmatpush1.msra.mxu0 0.0
        %503 = vmatprep.subr.mxu0 0.0
        %504 = vmatpush1.msra.mxu0 0.0
        %505 = vmatprep.subr.mxu0 0.0
        %506 = vmatpush1.msra.mxu0 0.0
        %507 = vmatprep.subr.mxu0 0.0
        %508 = vmatpush1.msra.mxu0 0.0
        %509 = vmatprep.subr.mxu0 0.0
        %510 = vmatpush1.msra.mxu0 0.0
        %511 = vmatprep.subr.mxu0 0.0
        %512 = vmatpush1.msra.mxu0 0.0
        %513 = vmatprep.subr.mxu0 0.0
        %514 = vmatpush1.msra.mxu0 0.0
        %515 = vmatprep.subr.mxu0 0.0
        %516 = vmatpush1.msra.mxu0 0.0
        %517 = vmatprep.subr.mxu0 0.0
        %518 = vmatpush1.msra.mxu0 0.0
        %519 = vmatprep.subr.mxu0 0.0
        %520 = vmatpush1.msra.mxu0 0.0
        %521 = vmatprep.subr.mxu0 0.0
        %522 = vmatpush1.msra.mxu0 0.0
        %523 = vmatprep.subr.mxu0 0.0
        %524 = vmatpush1.msra.mxu0 0.0
        %525 = vmatprep.subr.mxu0 0.0
        %526 = vmatpush1.msra.mxu0 0.0
        %527 = vmatprep.subr.mxu0 0.0
        %528 = vmatpush1.msra.mxu0 0.0
        %529 = vmatprep.subr.mxu0 0.0
        %530 = vmatpush1.msra.mxu0 0.0
        %531 = vmatprep.subr.mxu0 0.0
        %532 = vmatpush1.msra.mxu0 0.0
        %533 = vmatprep.subr.mxu0 0.0
        %534 = vmatpush1.msra.mxu0 0.0
        %535 = vmatprep.subr.mxu0 0.0
        %536 = vmatpush1.msra.mxu0 0.0
        %537 = vmatprep.subr.mxu0 0.0
        %538 = vmatpush1.msra.mxu0 0.0
        %539 = vmatprep.subr.mxu0 0.0
        %540 = vmatpush1.msra.mxu0 0.0
        %541 = vmatprep.subr.mxu0 0.0
        %542 = vmatpush1.msra.mxu0 0.0
        %543 = vmatprep.subr.mxu0 0.0
        %544 = vmatpush1.msra.mxu0 0.0
        %545 = vmatprep.subr.mxu0 0.0
        %546 = vmatpush1.msra.mxu0 0.0
        %547 = vmatprep.mubr.f32.mxu0 0.0
        %548 = vmatmul.mubr.f32.gmra.mrb[0].mxu0 %v481
        %v549 = vpop.f32.mrb[0].mxu0
        %v550 = vadd.f32 0.0, %v549
        %v551 = vpop.f32.mrb[0].mxu0
        %552 = vdwg.mxu0
        %v553 = vrcp.pop %v476
        %v554 = vmul.f32 %v550, %v553
        %v555 = vld [vmem:[#allocation3] sm:$0xff]
        %v556 = vld [vmem:[#allocation10] sm:$0xff]
        %v558 = vsel %vm391, %v554, 0
        %560 = vmatprep.subr.mxu0 0.0
        %561 = vmatpush1.msra.mxu0 %v556
        %562 = vmatprep.subr.mxu0 0.0
        %563 = vmatpush1.msra.mxu0 0.0
        %564 = vmatprep.subr.mxu0 0.0
        %565 = vmatpush1.msra.mxu0 0.0
        %566 = vmatprep.subr.mxu0 0.0
        %567 = vmatpush1.msra.mxu0 0.0
        %568 = vmatprep.subr.mxu0 0.0
        %569 = vmatpush1.msra.mxu0 0.0
        %570 = vmatprep.subr.mxu0 0.0
        %571 = vmatpush1.msra.mxu0 0.0
        %572 = vmatprep.subr.mxu0 0.0
        %573 = vmatpush1.msra.mxu0 0.0
        %574 = vmatprep.subr.mxu0 0.0
        %575 = vmatpush1.msra.mxu0 0.0
        %576 = vmatprep.subr.mxu0 0.0
        %577 = vmatpush1.msra.mxu0 0.0
        %578 = vmatprep.subr.mxu0 0.0
        %579 = vmatpush1.msra.mxu0 0.0
        %580 = vmatprep.subr.mxu0 0.0
        %581 = vmatpush1.msra.mxu0 0.0
        %582 = vmatprep.subr.mxu0 0.0
        %583 = vmatpush1.msra.mxu0 0.0
        %584 = vmatprep.subr.mxu0 0.0
        %585 = vmatpush1.msra.mxu0 0.0
        %586 = vmatprep.subr.mxu0 0.0
        %587 = vmatpush1.msra.mxu0 0.0
        %588 = vmatprep.subr.mxu0 0.0
        %589 = vmatpush1.msra.mxu0 0.0
        %590 = vmatprep.subr.mxu0 0.0
        %591 = vmatpush1.msra.mxu0 0.0
        %592 = vmatprep.subr.mxu0 0.0
        %593 = vmatpush1.msra.mxu0 0.0
        %594 = vmatprep.subr.mxu0 0.0
        %595 = vmatpush1.msra.mxu0 0.0
        %596 = vmatprep.subr.mxu0 0.0
        %597 = vmatpush1.msra.mxu0 0.0
        %598 = vmatprep.subr.mxu0 0.0
        %599 = vmatpush1.msra.mxu0 0.0
        %600 = vmatprep.subr.mxu0 0.0
        %601 = vmatpush1.msra.mxu0 0.0
        %602 = vmatprep.subr.mxu0 0.0
        %603 = vmatpush1.msra.mxu0 0.0
        %604 = vmatprep.subr.mxu0 0.0
        %605 = vmatpush1.msra.mxu0 0.0
        %606 = vmatprep.subr.mxu0 0.0
        %607 = vmatpush1.msra.mxu0 0.0
        %608 = vmatprep.subr.mxu0 0.0
        %609 = vmatpush1.msra.mxu0 0.0
        %610 = vmatprep.subr.mxu0 0.0
        %611 = vmatpush1.msra.mxu0 0.0
        %612 = vmatprep.subr.mxu0 0.0
        %613 = vmatpush1.msra.mxu0 0.0
        %614 = vmatprep.subr.mxu0 0.0
        %615 = vmatpush1.msra.mxu0 0.0
        %616 = vmatprep.subr.mxu0 0.0
        %617 = vmatpush1.msra.mxu0 0.0
        %618 = vmatprep.subr.mxu0 0.0
        %619 = vmatpush1.msra.mxu0 0.0
        %620 = vmatprep.subr.mxu0 0.0
        %621 = vmatpush1.msra.mxu0 0.0
        %622 = vmatprep.subr.mxu0 0.0
        %623 = vmatpush1.msra.mxu0 0.0
        %624 = vmatprep.mubr.f32.mxu0 0.0
        %625 = vmatmul.mubr.f32.gmra.mrb[0].mxu0 %v558
        %v626 = vpop.f32.mrb[0].mxu0
        %v627 = vadd.f32 0.0, %v626
        %v628 = vpop.f32.mrb[0].mxu0
        %629 = vdwg.mxu0
        %v630 = vadd.f32 %v555, %v627
        %631 = vst.msk [vmem:[#allocation3] sm:$0xff] %vm311, %v630
        %v632 = vld [vmem:[#allocation2] sm:$0xff]
        %633 = vrot.lane.b32.xlu0 %v388, 120
        %v634 = vpop.permute.xlu0 %633
        %636 = vrot.lane.b32.xlu0 %v632, 120
        %v637 = vpop.permute.xlu0 %636
        %v638 = vsel %vm391, %v634, 0
        %v640 = vsel %vm391, %v637, 0
        %642 = vmatprep.subr.mxu0 0.0
        %643 = vmatpush1.xpose.msra.mxu0 %v640
        %644 = vmatprep.subr.mxu0 0.0
        %645 = vmatpush1.xpose.msra.mxu0 0.0
        %646 = vmatprep.subr.mxu0 0.0
        %647 = vmatpush1.xpose.msra.mxu0 0.0
        %648 = vmatprep.subr.mxu0 0.0
        %649 = vmatpush1.xpose.msra.mxu0 0.0
        %650 = vmatprep.subr.mxu0 0.0
        %651 = vmatpush1.xpose.msra.mxu0 0.0
        %652 = vmatprep.subr.mxu0 0.0
        %653 = vmatpush1.xpose.msra.mxu0 0.0
        %654 = vmatprep.subr.mxu0 0.0
        %655 = vmatpush1.xpose.msra.mxu0 0.0
        %656 = vmatprep.subr.mxu0 0.0
        %657 = vmatpush1.xpose.msra.mxu0 0.0
        %658 = vmatprep.subr.mxu0 0.0
        %659 = vmatpush1.xpose.msra.mxu0 0.0
        %660 = vmatprep.subr.mxu0 0.0
        %661 = vmatpush1.xpose.msra.mxu0 0.0
        %662 = vmatprep.subr.mxu0 0.0
        %663 = vmatpush1.xpose.msra.mxu0 0.0
        %664 = vmatprep.subr.mxu0 0.0
        %665 = vmatpush1.xpose.msra.mxu0 0.0
        %666 = vmatprep.subr.mxu0 0.0
        %667 = vmatpush1.xpose.msra.mxu0 0.0
        %668 = vmatprep.subr.mxu0 0.0
        %669 = vmatpush1.xpose.msra.mxu0 0.0
        %670 = vmatprep.subr.mxu0 0.0
        %671 = vmatpush1.xpose.msra.mxu0 0.0
        %672 = vmatprep.subr.mxu0 0.0
        %673 = vmatpush1.xpose.msra.mxu0 0.0
        %674 = vmatprep.subr.mxu0 0.0
        %675 = vmatpush1.xpose.msra.mxu0 0.0
        %676 = vmatprep.subr.mxu0 0.0
        %677 = vmatpush1.xpose.msra.mxu0 0.0
        %678 = vmatprep.subr.mxu0 0.0
        %679 = vmatpush1.xpose.msra.mxu0 0.0
        %680 = vmatprep.subr.mxu0 0.0
        %681 = vmatpush1.xpose.msra.mxu0 0.0
        %682 = vmatprep.subr.mxu0 0.0
        %683 = vmatpush1.xpose.msra.mxu0 0.0
        %684 = vmatprep.subr.mxu0 0.0
        %685 = vmatpush1.xpose.msra.mxu0 0.0
        %686 = vmatprep.subr.mxu0 0.0
        %687 = vmatpush1.xpose.msra.mxu0 0.0
        %688 = vmatprep.subr.mxu0 0.0
        %689 = vmatpush1.xpose.msra.mxu0 0.0
        %690 = vmatprep.subr.mxu0 0.0
        %691 = vmatpush1.xpose.msra.mxu0 0.0
        %692 = vmatprep.subr.mxu0 0.0
        %693 = vmatpush1.xpose.msra.mxu0 0.0
        %694 = vmatprep.subr.mxu0 0.0
        %695 = vmatpush1.xpose.msra.mxu0 0.0
        %696 = vmatprep.subr.mxu0 0.0
        %697 = vmatpush1.xpose.msra.mxu0 0.0
        %698 = vmatprep.subr.mxu0 0.0
        %699 = vmatpush1.xpose.msra.mxu0 0.0
        %700 = vmatprep.subr.mxu0 0.0
        %701 = vmatpush1.xpose.msra.mxu0 0.0
        %702 = vmatprep.subr.mxu0 0.0
        %703 = vmatpush1.xpose.msra.mxu0 0.0
        %704 = vmatprep.subr.mxu0 0.0
        %705 = vmatpush1.xpose.msra.mxu0 0.0
        %706 = vmatprep.mubr.f32.mxu0 0.0
        %707 = vmatmul.mubr.f32.gmra.mrb[0].mxu0 %v638
        %v708 = vpop.f32.mrb[0].mxu0
        %v709 = vadd.f32 0.0, %v708
        %v710 = vpop.f32.mrb[0].mxu0
        %711 = vdwg.mxu0
        %v712 = vsel %vm391, %v709, -inf
        %713 = vmax.xlane.f32.xlu0 %v712
        %v714 = vpop.xlane.xlu0 %713
        %v715 = vsub.f32 %v709, %v714
        %v716 = vmul.f32 %v715, 1.442695
        %v717 = vpow.pop %v716
        %v718 = vsel %vm391, %v717, 0.0
        %719 = vadd.xlane.f32.xlu0 %v718
        %v720 = vpop.xlane.xlu0 %719
        %721 = vrot.lane.b32.xlu0 %v632, 88
        %v722 = vpop.permute.xlu0 %721
        %v725 = vsel %vm391, %v717, 0
        %727 = vmatprep.subr.mxu0 0.0
        %728 = vmatpush1.msra.mxu0 %v722
        %729 = vmatprep.subr.mxu0 0.0
        %730 = vmatpush1.msra.mxu0 0.0
        %731 = vmatprep.subr.mxu0 0.0
        %732 = vmatpush1.msra.mxu0 0.0
        %733 = vmatprep.subr.mxu0 0.0
        %734 = vmatpush1.msra.mxu0 0.0
        %735 = vmatprep.subr.mxu0 0.0
        %736 = vmatpush1.msra.mxu0 0.0
        %737 = vmatprep.subr.mxu0 0.0
        %738 = vmatpush1.msra.mxu0 0.0
        %739 = vmatprep.subr.mxu0 0.0
        %740 = vmatpush1.msra.mxu0 0.0
        %741 = vmatprep.subr.mxu0 0.0
        %742 = vmatpush1.msra.mxu0 0.0
        %743 = vmatprep.subr.mxu0 0.0
        %744 = vmatpush1.msra.mxu0 0.0
        %745 = vmatprep.subr.mxu0 0.0
        %746 = vmatpush1.msra.mxu0 0.0
        %747 = vmatprep.subr.mxu0 0.0
        %748 = vmatpush1.msra.mxu0 0.0
        %749 = vmatprep.subr.mxu0 0.0
        %750 = vmatpush1.msra.mxu0 0.0
        %751 = vmatprep.subr.mxu0 0.0
        %752 = vmatpush1.msra.mxu0 0.0
        %753 = vmatprep.subr.mxu0 0.0
        %754 = vmatpush1.msra.mxu0 0.0
        %755 = vmatprep.subr.mxu0 0.0
        %756 = vmatpush1.msra.mxu0 0.0
        %757 = vmatprep.subr.mxu0 0.0
        %758 = vmatpush1.msra.mxu0 0.0
        %759 = vmatprep.subr.mxu0 0.0
        %760 = vmatpush1.msra.mxu0 0.0
        %761 = vmatprep.subr.mxu0 0.0
        %762 = vmatpush1.msra.mxu0 0.0
        %763 = vmatprep.subr.mxu0 0.0
        %764 = vmatpush1.msra.mxu0 0.0
        %765 = vmatprep.subr.mxu0 0.0
        %766 = vmatpush1.msra.mxu0 0.0
        %767 = vmatprep.subr.mxu0 0.0
        %768 = vmatpush1.msra.mxu0 0.0
        %769 = vmatprep.subr.mxu0 0.0
        %770 = vmatpush1.msra.mxu0 0.0
        %771 = vmatprep.subr.mxu0 0.0
        %772 = vmatpush1.msra.mxu0 0.0
        %773 = vmatprep.subr.mxu0 0.0
        %774 = vmatpush1.msra.mxu0 0.0
        %775 = vmatprep.subr.mxu0 0.0
        %776 = vmatpush1.msra.mxu0 0.0
        %777 = vmatprep.subr.mxu0 0.0
        %778 = vmatpush1.msra.mxu0 0.0
        %779 = vmatprep.subr.mxu0 0.0
        %780 = vmatpush1.msra.mxu0 0.0
        %781 = vmatprep.subr.mxu0 0.0
        %782 = vmatpush1.msra.mxu0 0.0
        %783 = vmatprep.subr.mxu0 0.0
        %784 = vmatpush1.msra.mxu0 0.0
        %785 = vmatprep.subr.mxu0 0.0
        %786 = vmatpush1.msra.mxu0 0.0
        %787 = vmatprep.subr.mxu0 0.0
        %788 = vmatpush1.msra.mxu0 0.0
        %789 = vmatprep.subr.mxu0 0.0
        %790 = vmatpush1.msra.mxu0 0.0
        %791 = vmatprep.mubr.f32.mxu0 0.0
        %792 = vmatmul.mubr.f32.gmra.mrb[0].mxu0 %v725
        %v793 = vpop.f32.mrb[0].mxu0
        %v794 = vadd.f32 0.0, %v793
        %v795 = vpop.f32.mrb[0].mxu0
        %796 = vdwg.mxu0
        %v797 = vrcp.pop %v720
        %v798 = vmul.f32 %v794, %v797
        %v799 = vld [vmem:[#allocation3] sm:$0xff]
        %s800 = scalar_lea.vmem [#allocation10], 8
        %v801 = vld [vmem:[%s800] sm:$0xff]
        %v803 = vsel %vm391, %v798, 0
        %805 = vmatprep.subr.mxu0 0.0
        %806 = vmatpush1.msra.mxu0 %v801
        %807 = vmatprep.subr.mxu0 0.0
        %808 = vmatpush1.msra.mxu0 0.0
        %809 = vmatprep.subr.mxu0 0.0
        %810 = vmatpush1.msra.mxu0 0.0
        %811 = vmatprep.subr.mxu0 0.0
        %812 = vmatpush1.msra.mxu0 0.0
        %813 = vmatprep.subr.mxu0 0.0
        %814 = vmatpush1.msra.mxu0 0.0
        %815 = vmatprep.subr.mxu0 0.0
        %816 = vmatpush1.msra.mxu0 0.0
        %817 = vmatprep.subr.mxu0 0.0
        %818 = vmatpush1.msra.mxu0 0.0
        %819 = vmatprep.subr.mxu0 0.0
        %820 = vmatpush1.msra.mxu0 0.0
        %821 = vmatprep.subr.mxu0 0.0
        %822 = vmatpush1.msra.mxu0 0.0
        %823 = vmatprep.subr.mxu0 0.0
        %824 = vmatpush1.msra.mxu0 0.0
        %825 = vmatprep.subr.mxu0 0.0
        %826 = vmatpush1.msra.mxu0 0.0
        %827 = vmatprep.subr.mxu0 0.0
        %828 = vmatpush1.msra.mxu0 0.0
        %829 = vmatprep.subr.mxu0 0.0
        %830 = vmatpush1.msra.mxu0 0.0
        %831 = vmatprep.subr.mxu0 0.0
        %832 = vmatpush1.msra.mxu0 0.0
        %833 = vmatprep.subr.mxu0 0.0
        %834 = vmatpush1.msra.mxu0 0.0
        %835 = vmatprep.subr.mxu0 0.0
        %836 = vmatpush1.msra.mxu0 0.0
        %837 = vmatprep.subr.mxu0 0.0
        %838 = vmatpush1.msra.mxu0 0.0
        %839 = vmatprep.subr.mxu0 0.0
        %840 = vmatpush1.msra.mxu0 0.0
        %841 = vmatprep.subr.mxu0 0.0
        %842 = vmatpush1.msra.mxu0 0.0
        %843 = vmatprep.subr.mxu0 0.0
        %844 = vmatpush1.msra.mxu0 0.0
        %845 = vmatprep.subr.mxu0 0.0
        %846 = vmatpush1.msra.mxu0 0.0
        %847 = vmatprep.subr.mxu0 0.0
        %848 = vmatpush1.msra.mxu0 0.0
        %849 = vmatprep.subr.mxu0 0.0
        %850 = vmatpush1.msra.mxu0 0.0
        %851 = vmatprep.subr.mxu0 0.0
        %852 = vmatpush1.msra.mxu0 0.0
        %853 = vmatprep.subr.mxu0 0.0
        %854 = vmatpush1.msra.mxu0 0.0
        %855 = vmatprep.subr.mxu0 0.0
        %856 = vmatpush1.msra.mxu0 0.0
        %857 = vmatprep.subr.mxu0 0.0
        %858 = vmatpush1.msra.mxu0 0.0
        %859 = vmatprep.subr.mxu0 0.0
        %860 = vmatpush1.msra.mxu0 0.0
        %861 = vmatprep.subr.mxu0 0.0
        %862 = vmatpush1.msra.mxu0 0.0
        %863 = vmatprep.subr.mxu0 0.0
        %864 = vmatpush1.msra.mxu0 0.0
        %865 = vmatprep.subr.mxu0 0.0
        %866 = vmatpush1.msra.mxu0 0.0
        %867 = vmatprep.subr.mxu0 0.0
        %868 = vmatpush1.msra.mxu0 0.0
        %869 = vmatprep.mubr.f32.mxu0 0.0
        %870 = vmatmul.mubr.f32.gmra.mrb[0].mxu0 %v803
        %v871 = vpop.f32.mrb[0].mxu0
        %v872 = vadd.f32 0.0, %v871
        %v873 = vpop.f32.mrb[0].mxu0
        %874 = vdwg.mxu0
        %v875 = vadd.f32 %v799, %v872
        %876 = vst.msk [vmem:[#allocation3] sm:$0xff] %vm311, %v875
        %v877 = vld [vmem:[#allocation2] sm:$0xff]
        %878 = vrot.lane.b32.xlu0 %v388, 112
        %v879 = vpop.permute.xlu0 %878
        %881 = vrot.lane.b32.xlu0 %v877, 112
        %v882 = vpop.permute.xlu0 %881
        %v883 = vsel %vm391, %v879, 0
        %v885 = vsel %vm391, %v882, 0
        %887 = vmatprep.subr.mxu0 0.0
        %888 = vmatpush1.xpose.msra.mxu0 %v885
        %889 = vmatprep.subr.mxu0 0.0
        %890 = vmatpush1.xpose.msra.mxu0 0.0
        %891 = vmatprep.subr.mxu0 0.0
        %892 = vmatpush1.xpose.msra.mxu0 0.0
        %893 = vmatprep.subr.mxu0 0.0
        %894 = vmatpush1.xpose.msra.mxu0 0.0
        %895 = vmatprep.subr.mxu0 0.0
        %896 = vmatpush1.xpose.msra.mxu0 0.0
        %897 = vmatprep.subr.mxu0 0.0
        %898 = vmatpush1.xpose.msra.mxu0 0.0
        %899 = vmatprep.subr.mxu0 0.0
        %900 = vmatpush1.xpose.msra.mxu0 0.0
        %901 = vmatprep.subr.mxu0 0.0
        %902 = vmatpush1.xpose.msra.mxu0 0.0
        %903 = vmatprep.subr.mxu0 0.0
        %904 = vmatpush1.xpose.msra.mxu0 0.0
        %905 = vmatprep.subr.mxu0 0.0
        %906 = vmatpush1.xpose.msra.mxu0 0.0
        %907 = vmatprep.subr.mxu0 0.0
        %908 = vmatpush1.xpose.msra.mxu0 0.0
        %909 = vmatprep.subr.mxu0 0.0
        %910 = vmatpush1.xpose.msra.mxu0 0.0
        %911 = vmatprep.subr.mxu0 0.0
        %912 = vmatpush1.xpose.msra.mxu0 0.0
        %913 = vmatprep.subr.mxu0 0.0
        %914 = vmatpush1.xpose.msra.mxu0 0.0
        %915 = vmatprep.subr.mxu0 0.0
        %916 = vmatpush1.xpose.msra.mxu0 0.0
        %917 = vmatprep.subr.mxu0 0.0
        %918 = vmatpush1.xpose.msra.mxu0 0.0
        %919 = vmatprep.subr.mxu0 0.0
        %920 = vmatpush1.xpose.msra.mxu0 0.0
        %921 = vmatprep.subr.mxu0 0.0
        %922 = vmatpush1.xpose.msra.mxu0 0.0
        %923 = vmatprep.subr.mxu0 0.0
        %924 = vmatpush1.xpose.msra.mxu0 0.0
        %925 = vmatprep.subr.mxu0 0.0
        %926 = vmatpush1.xpose.msra.mxu0 0.0
        %927 = vmatprep.subr.mxu0 0.0
        %928 = vmatpush1.xpose.msra.mxu0 0.0
        %929 = vmatprep.subr.mxu0 0.0
        %930 = vmatpush1.xpose.msra.mxu0 0.0
        %931 = vmatprep.subr.mxu0 0.0
        %932 = vmatpush1.xpose.msra.mxu0 0.0
        %933 = vmatprep.subr.mxu0 0.0
        %934 = vmatpush1.xpose.msra.mxu0 0.0
        %935 = vmatprep.subr.mxu0 0.0
        %936 = vmatpush1.xpose.msra.mxu0 0.0
        %937 = vmatprep.subr.mxu0 0.0
        %938 = vmatpush1.xpose.msra.mxu0 0.0
        %939 = vmatprep.subr.mxu0 0.0
        %940 = vmatpush1.xpose.msra.mxu0 0.0
        %941 = vmatprep.subr.mxu0 0.0
        %942 = vmatpush1.xpose.msra.mxu0 0.0
        %943 = vmatprep.subr.mxu0 0.0
        %944 = vmatpush1.xpose.msra.mxu0 0.0
        %945 = vmatprep.subr.mxu0 0.0
        %946 = vmatpush1.xpose.msra.mxu0 0.0
        %947 = vmatprep.subr.mxu0 0.0
        %948 = vmatpush1.xpose.msra.mxu0 0.0
        %949 = vmatprep.subr.mxu0 0.0
        %950 = vmatpush1.xpose.msra.mxu0 0.0
        %951 = vmatprep.mubr.f32.mxu0 0.0
        %952 = vmatmul.mubr.f32.gmra.mrb[0].mxu0 %v883
        %v953 = vpop.f32.mrb[0].mxu0
        %v954 = vadd.f32 0.0, %v953
        %v955 = vpop.f32.mrb[0].mxu0
        %956 = vdwg.mxu0
        %v957 = vsel %vm391, %v954, -inf
        %958 = vmax.xlane.f32.xlu0 %v957
        %v959 = vpop.xlane.xlu0 %958
        %v960 = vsub.f32 %v954, %v959
        %v961 = vmul.f32 %v960, 1.442695
        %v962 = vpow.pop %v961
        %v963 = vsel %vm391, %v962, 0.0
        %964 = vadd.xlane.f32.xlu0 %v963
        %v965 = vpop.xlane.xlu0 %964
        %966 = vrot.lane.b32.xlu0 %v877, 80
        %v967 = vpop.permute.xlu0 %966
        %v970 = vsel %vm391, %v962, 0
        %972 = vmatprep.subr.mxu0 0.0
        %973 = vmatpush1.msra.mxu0 %v967
        %974 = vmatprep.subr.mxu0 0.0
        %975 = vmatpush1.msra.mxu0 0.0
        %976 = vmatprep.subr.mxu0 0.0
        %977 = vmatpush1.msra.mxu0 0.0
        %978 = vmatprep.subr.mxu0 0.0
        %979 = vmatpush1.msra.mxu0 0.0
        %980 = vmatprep.subr.mxu0 0.0
        %981 = vmatpush1.msra.mxu0 0.0
        %982 = vmatprep.subr.mxu0 0.0
        %983 = vmatpush1.msra.mxu0 0.0
        %984 = vmatprep.subr.mxu0 0.0
        %985 = vmatpush1.msra.mxu0 0.0
        %986 = vmatprep.subr.mxu0 0.0
        %987 = vmatpush1.msra.mxu0 0.0
        %988 = vmatprep.subr.mxu0 0.0
        %989 = vmatpush1.msra.mxu0 0.0
        %990 = vmatprep.subr.mxu0 0.0
        %991 = vmatpush1.msra.mxu0 0.0
        %992 = vmatprep.subr.mxu0 0.0
        %993 = vmatpush1.msra.mxu0 0.0
        %994 = vmatprep.subr.mxu0 0.0
        %995 = vmatpush1.msra.mxu0 0.0
        %996 = vmatprep.subr.mxu0 0.0
        %997 = vmatpush1.msra.mxu0 0.0
        %998 = vmatprep.subr.mxu0 0.0
        %999 = vmatpush1.msra.mxu0 0.0
        %1000 = vmatprep.subr.mxu0 0.0
        %1001 = vmatpush1.msra.mxu0 0.0
        %1002 = vmatprep.subr.mxu0 0.0
        %1003 = vmatpush1.msra.mxu0 0.0
        %1004 = vmatprep.subr.mxu0 0.0
        %1005 = vmatpush1.msra.mxu0 0.0
        %1006 = vmatprep.subr.mxu0 0.0
        %1007 = vmatpush1.msra.mxu0 0.0
        %1008 = vmatprep.subr.mxu0 0.0
        %1009 = vmatpush1.msra.mxu0 0.0
        %1010 = vmatprep.subr.mxu0 0.0
        %1011 = vmatpush1.msra.mxu0 0.0
        %1012 = vmatprep.subr.mxu0 0.0
        %1013 = vmatpush1.msra.mxu0 0.0
        %1014 = vmatprep.subr.mxu0 0.0
        %1015 = vmatpush1.msra.mxu0 0.0
        %1016 = vmatprep.subr.mxu0 0.0
        %1017 = vmatpush1.msra.mxu0 0.0
        %1018 = vmatprep.subr.mxu0 0.0
        %1019 = vmatpush1.msra.mxu0 0.0
        %1020 = vmatprep.subr.mxu0 0.0
        %1021 = vmatpush1.msra.mxu0 0.0
        %1022 = vmatprep.subr.mxu0 0.0
        %1023 = vmatpush1.msra.mxu0 0.0
        %1024 = vmatprep.subr.mxu0 0.0
        %1025 = vmatpush1.msra.mxu0 0.0
        %1026 = vmatprep.subr.mxu0 0.0
        %1027 = vmatpush1.msra.mxu0 0.0
        %1028 = vmatprep.subr.mxu0 0.0
        %1029 = vmatpush1.msra.mxu0 0.0
        %1030 = vmatprep.subr.mxu0 0.0
        %1031 = vmatpush1.msra.mxu0 0.0
        %1032 = vmatprep.subr.mxu0 0.0
        %1033 = vmatpush1.msra.mxu0 0.0
        %1034 = vmatprep.subr.mxu0 0.0
        %1035 = vmatpush1.msra.mxu0 0.0
        %1036 = vmatprep.mubr.f32.mxu0 0.0
        %1037 = vmatmul.mubr.f32.gmra.mrb[0].mxu0 %v970
        %v1038 = vpop.f32.mrb[0].mxu0
        %v1039 = vadd.f32 0.0, %v1038
        %v1040 = vpop.f32.mrb[0].mxu0
        %1041 = vdwg.mxu0
        %v1042 = vrcp.pop %v965
        %v1043 = vmul.f32 %v1039, %v1042
        %v1044 = vld [vmem:[#allocation3] sm:$0xff]
        %s1045 = scalar_lea.vmem [#allocation10], 16
        %v1046 = vld [vmem:[%s1045] sm:$0xff]
        %v1048 = vsel %vm391, %v1043, 0
        %1050 = vmatprep.subr.mxu0 0.0
        %1051 = vmatpush1.msra.mxu0 %v1046
        %1052 = vmatprep.subr.mxu0 0.0
        %1053 = vmatpush1.msra.mxu0 0.0
        %1054 = vmatprep.subr.mxu0 0.0
        %1055 = vmatpush1.msra.mxu0 0.0
        %1056 = vmatprep.subr.mxu0 0.0
        %1057 = vmatpush1.msra.mxu0 0.0
        %1058 = vmatprep.subr.mxu0 0.0
        %1059 = vmatpush1.msra.mxu0 0.0
        %1060 = vmatprep.subr.mxu0 0.0
        %1061 = vmatpush1.msra.mxu0 0.0
        %1062 = vmatprep.subr.mxu0 0.0
        %1063 = vmatpush1.msra.mxu0 0.0
        %1064 = vmatprep.subr.mxu0 0.0
        %1065 = vmatpush1.msra.mxu0 0.0
        %1066 = vmatprep.subr.mxu0 0.0
        %1067 = vmatpush1.msra.mxu0 0.0
        %1068 = vmatprep.subr.mxu0 0.0
        %1069 = vmatpush1.msra.mxu0 0.0
        %1070 = vmatprep.subr.mxu0 0.0
        %1071 = vmatpush1.msra.mxu0 0.0
        %1072 = vmatprep.subr.mxu0 0.0
        %1073 = vmatpush1.msra.mxu0 0.0
        %1074 = vmatprep.subr.mxu0 0.0
        %1075 = vmatpush1.msra.mxu0 0.0
        %1076 = vmatprep.subr.mxu0 0.0
        %1077 = vmatpush1.msra.mxu0 0.0
        %1078 = vmatprep.subr.mxu0 0.0
        %1079 = vmatpush1.msra.mxu0 0.0
        %1080 = vmatprep.subr.mxu0 0.0
        %1081 = vmatpush1.msra.mxu0 0.0
        %1082 = vmatprep.subr.mxu0 0.0
        %1083 = vmatpush1.msra.mxu0 0.0
        %1084 = vmatprep.subr.mxu0 0.0
        %1085 = vmatpush1.msra.mxu0 0.0
        %1086 = vmatprep.subr.mxu0 0.0
        %1087 = vmatpush1.msra.mxu0 0.0
        %1088 = vmatprep.subr.mxu0 0.0
        %1089 = vmatpush1.msra.mxu0 0.0
        %1090 = vmatprep.subr.mxu0 0.0
        %1091 = vmatpush1.msra.mxu0 0.0
        %1092 = vmatprep.subr.mxu0 0.0
        %1093 = vmatpush1.msra.mxu0 0.0
        %1094 = vmatprep.subr.mxu0 0.0
        %1095 = vmatpush1.msra.mxu0 0.0
        %1096 = vmatprep.subr.mxu0 0.0
        %1097 = vmatpush1.msra.mxu0 0.0
        %1098 = vmatprep.subr.mxu0 0.0
        %1099 = vmatpush1.msra.mxu0 0.0
        %1100 = vmatprep.subr.mxu0 0.0
        %1101 = vmatpush1.msra.mxu0 0.0
        %1102 = vmatprep.subr.mxu0 0.0
        %1103 = vmatpush1.msra.mxu0 0.0
        %1104 = vmatprep.subr.mxu0 0.0
        %1105 = vmatpush1.msra.mxu0 0.0
        %1106 = vmatprep.subr.mxu0 0.0
        %1107 = vmatpush1.msra.mxu0 0.0
        %1108 = vmatprep.subr.mxu0 0.0
        %1109 = vmatpush1.msra.mxu0 0.0
        %1110 = vmatprep.subr.mxu0 0.0
        %1111 = vmatpush1.msra.mxu0 0.0
        %1112 = vmatprep.subr.mxu0 0.0
        %1113 = vmatpush1.msra.mxu0 0.0
        %1114 = vmatprep.mubr.f32.mxu0 0.0
        %1115 = vmatmul.mubr.f32.gmra.mrb[0].mxu0 %v1048
        %v1116 = vpop.f32.mrb[0].mxu0
        %v1117 = vadd.f32 0.0, %v1116
        %v1118 = vpop.f32.mrb[0].mxu0
        %1119 = vdwg.mxu0
        %v1120 = vadd.f32 %v1044, %v1117
        %1121 = vst.msk [vmem:[#allocation3] sm:$0xff] %vm311, %v1120
        %v1122 = vld [vmem:[#allocation2] sm:$0xff]
        %1123 = vrot.lane.b32.xlu0 %v388, 104
        %v1124 = vpop.permute.xlu0 %1123
        %1126 = vrot.lane.b32.xlu0 %v1122, 104
        %v1127 = vpop.permute.xlu0 %1126
        %v1128 = vsel %vm391, %v1124, 0
        %v1130 = vsel %vm391, %v1127, 0
        %1132 = vmatprep.subr.mxu0 0.0
        %1133 = vmatpush1.xpose.msra.mxu0 %v1130
        %1134 = vmatprep.subr.mxu0 0.0
        %1135 = vmatpush1.xpose.msra.mxu0 0.0
        %1136 = vmatprep.subr.mxu0 0.0
        %1137 = vmatpush1.xpose.msra.mxu0 0.0
        %1138 = vmatprep.subr.mxu0 0.0
        %1139 = vmatpush1.xpose.msra.mxu0 0.0
        %1140 = vmatprep.subr.mxu0 0.0
        %1141 = vmatpush1.xpose.msra.mxu0 0.0
        %1142 = vmatprep.subr.mxu0 0.0
        %1143 = vmatpush1.xpose.msra.mxu0 0.0
        %1144 = vmatprep.subr.mxu0 0.0
        %1145 = vmatpush1.xpose.msra.mxu0 0.0
        %1146 = vmatprep.subr.mxu0 0.0
        %1147 = vmatpush1.xpose.msra.mxu0 0.0
        %1148 = vmatprep.subr.mxu0 0.0
        %1149 = vmatpush1.xpose.msra.mxu0 0.0
        %1150 = vmatprep.subr.mxu0 0.0
        %1151 = vmatpush1.xpose.msra.mxu0 0.0
        %1152 = vmatprep.subr.mxu0 0.0
        %1153 = vmatpush1.xpose.msra.mxu0 0.0
        %1154 = vmatprep.subr.mxu0 0.0
        %1155 = vmatpush1.xpose.msra.mxu0 0.0
        %1156 = vmatprep.subr.mxu0 0.0
        %1157 = vmatpush1.xpose.msra.mxu0 0.0
        %1158 = vmatprep.subr.mxu0 0.0
        %1159 = vmatpush1.xpose.msra.mxu0 0.0
        %1160 = vmatprep.subr.mxu0 0.0
        %1161 = vmatpush1.xpose.msra.mxu0 0.0
        %1162 = vmatprep.subr.mxu0 0.0
        %1163 = vmatpush1.xpose.msra.mxu0 0.0
        %1164 = vmatprep.subr.mxu0 0.0
        %1165 = vmatpush1.xpose.msra.mxu0 0.0
        %1166 = vmatprep.subr.mxu0 0.0
        %1167 = vmatpush1.xpose.msra.mxu0 0.0
        %1168 = vmatprep.subr.mxu0 0.0
        %1169 = vmatpush1.xpose.msra.mxu0 0.0
        %1170 = vmatprep.subr.mxu0 0.0
        %1171 = vmatpush1.xpose.msra.mxu0 0.0
        %1172 = vmatprep.subr.mxu0 0.0
        %1173 = vmatpush1.xpose.msra.mxu0 0.0
        %1174 = vmatprep.subr.mxu0 0.0
        %1175 = vmatpush1.xpose.msra.mxu0 0.0
        %1176 = vmatprep.subr.mxu0 0.0
        %1177 = vmatpush1.xpose.msra.mxu0 0.0
        %1178 = vmatprep.subr.mxu0 0.0
        %1179 = vmatpush1.xpose.msra.mxu0 0.0
        %1180 = vmatprep.subr.mxu0 0.0
        %1181 = vmatpush1.xpose.msra.mxu0 0.0
        %1182 = vmatprep.subr.mxu0 0.0
        %1183 = vmatpush1.xpose.msra.mxu0 0.0
        %1184 = vmatprep.subr.mxu0 0.0
        %1185 = vmatpush1.xpose.msra.mxu0 0.0
        %1186 = vmatprep.subr.mxu0 0.0
        %1187 = vmatpush1.xpose.msra.mxu0 0.0
        %1188 = vmatprep.subr.mxu0 0.0
        %1189 = vmatpush1.xpose.msra.mxu0 0.0
        %1190 = vmatprep.subr.mxu0 0.0
        %1191 = vmatpush1.xpose.msra.mxu0 0.0
        %1192 = vmatprep.subr.mxu0 0.0
        %1193 = vmatpush1.xpose.msra.mxu0 0.0
        %1194 = vmatprep.subr.mxu0 0.0
        %1195 = vmatpush1.xpose.msra.mxu0 0.0
        %1196 = vmatprep.mubr.f32.mxu0 0.0
        %1197 = vmatmul.mubr.f32.gmra.mrb[0].mxu0 %v1128
        %v1198 = vpop.f32.mrb[0].mxu0
        %v1199 = vadd.f32 0.0, %v1198
        %v1200 = vpop.f32.mrb[0].mxu0
        %1201 = vdwg.mxu0
        %v1202 = vsel %vm391, %v1199, -inf
        %1203 = vmax.xlane.f32.xlu0 %v1202
        %v1204 = vpop.xlane.xlu0 %1203
        %v1205 = vsub.f32 %v1199, %v1204
        %v1206 = vmul.f32 %v1205, 1.442695
        %v1207 = vpow.pop %v1206
        %v1208 = vsel %vm391, %v1207, 0.0
        %1209 = vadd.xlane.f32.xlu0 %v1208
        %v1210 = vpop.xlane.xlu0 %1209
        %1211 = vrot.lane.b32.xlu0 %v1122, 72
        %v1212 = vpop.permute.xlu0 %1211
        %v1215 = vsel %vm391, %v1207, 0
        %1217 = vmatprep.subr.mxu0 0.0
        %1218 = vmatpush1.msra.mxu0 %v1212
        %1219 = vmatprep.subr.mxu0 0.0
        %1220 = vmatpush1.msra.mxu0 0.0
        %1221 = vmatprep.subr.mxu0 0.0
        %1222 = vmatpush1.msra.mxu0 0.0
        %1223 = vmatprep.subr.mxu0 0.0
        %1224 = vmatpush1.msra.mxu0 0.0
        %1225 = vmatprep.subr.mxu0 0.0
        %1226 = vmatpush1.msra.mxu0 0.0
        %1227 = vmatprep.subr.mxu0 0.0
        %1228 = vmatpush1.msra.mxu0 0.0
        %1229 = vmatprep.subr.mxu0 0.0
        %1230 = vmatpush1.msra.mxu0 0.0
        %1231 = vmatprep.subr.mxu0 0.0
        %1232 = vmatpush1.msra.mxu0 0.0
        %1233 = vmatprep.subr.mxu0 0.0
        %1234 = vmatpush1.msra.mxu0 0.0
        %1235 = vmatprep.subr.mxu0 0.0
        %1236 = vmatpush1.msra.mxu0 0.0
        %1237 = vmatprep.subr.mxu0 0.0
        %1238 = vmatpush1.msra.mxu0 0.0
        %1239 = vmatprep.subr.mxu0 0.0
        %1240 = vmatpush1.msra.mxu0 0.0
        %1241 = vmatprep.subr.mxu0 0.0
        %1242 = vmatpush1.msra.mxu0 0.0
        %1243 = vmatprep.subr.mxu0 0.0
        %1244 = vmatpush1.msra.mxu0 0.0
        %1245 = vmatprep.subr.mxu0 0.0
        %1246 = vmatpush1.msra.mxu0 0.0
        %1247 = vmatprep.subr.mxu0 0.0
        %1248 = vmatpush1.msra.mxu0 0.0
        %1249 = vmatprep.subr.mxu0 0.0
        %1250 = vmatpush1.msra.mxu0 0.0
        %1251 = vmatprep.subr.mxu0 0.0
        %1252 = vmatpush1.msra.mxu0 0.0
        %1253 = vmatprep.subr.mxu0 0.0
        %1254 = vmatpush1.msra.mxu0 0.0
        %1255 = vmatprep.subr.mxu0 0.0
        %1256 = vmatpush1.msra.mxu0 0.0
        %1257 = vmatprep.subr.mxu0 0.0
        %1258 = vmatpush1.msra.mxu0 0.0
        %1259 = vmatprep.subr.mxu0 0.0
        %1260 = vmatpush1.msra.mxu0 0.0
        %1261 = vmatprep.subr.mxu0 0.0
        %1262 = vmatpush1.msra.mxu0 0.0
        %1263 = vmatprep.subr.mxu0 0.0
        %1264 = vmatpush1.msra.mxu0 0.0
        %1265 = vmatprep.subr.mxu0 0.0
        %1266 = vmatpush1.msra.mxu0 0.0
        %1267 = vmatprep.subr.mxu0 0.0
        %1268 = vmatpush1.msra.mxu0 0.0
        %1269 = vmatprep.subr.mxu0 0.0
        %1270 = vmatpush1.msra.mxu0 0.0
        %1271 = vmatprep.subr.mxu0 0.0
        %1272 = vmatpush1.msra.mxu0 0.0
        %1273 = vmatprep.subr.mxu0 0.0
        %1274 = vmatpush1.msra.mxu0 0.0
        %1275 = vmatprep.subr.mxu0 0.0
        %1276 = vmatpush1.msra.mxu0 0.0
        %1277 = vmatprep.subr.mxu0 0.0
        %1278 = vmatpush1.msra.mxu0 0.0
        %1279 = vmatprep.subr.mxu0 0.0
        %1280 = vmatpush1.msra.mxu0 0.0
        %1281 = vmatprep.mubr.f32.mxu0 0.0
        %1282 = vmatmul.mubr.f32.gmra.mrb[0].mxu0 %v1215
        %v1283 = vpop.f32.mrb[0].mxu0
        %v1284 = vadd.f32 0.0, %v1283
        %v1285 = vpop.f32.mrb[0].mxu0
        %1286 = vdwg.mxu0
        %v1287 = vrcp.pop %v1210
        %v1288 = vmul.f32 %v1284, %v1287
        %v1289 = vld [vmem:[#allocation3] sm:$0xff]
        %s1290 = scalar_lea.vmem [#allocation10], 24
        %v1291 = vld [vmem:[%s1290] sm:$0xff]
        %v1293 = vsel %vm391, %v1288, 0
        %1295 = vmatprep.subr.mxu0 0.0
        %1296 = vmatpush1.msra.mxu0 %v1291
        %1297 = vmatprep.subr.mxu0 0.0
        %1298 = vmatpush1.msra.mxu0 0.0
        %1299 = vmatprep.subr.mxu0 0.0
        %1300 = vmatpush1.msra.mxu0 0.0
        %1301 = vmatprep.subr.mxu0 0.0
        %1302 = vmatpush1.msra.mxu0 0.0
        %1303 = vmatprep.subr.mxu0 0.0
        %1304 = vmatpush1.msra.mxu0 0.0
        %1305 = vmatprep.subr.mxu0 0.0
        %1306 = vmatpush1.msra.mxu0 0.0
        %1307 = vmatprep.subr.mxu0 0.0
        %1308 = vmatpush1.msra.mxu0 0.0
        %1309 = vmatprep.subr.mxu0 0.0
        %1310 = vmatpush1.msra.mxu0 0.0
        %1311 = vmatprep.subr.mxu0 0.0
        %1312 = vmatpush1.msra.mxu0 0.0
        %1313 = vmatprep.subr.mxu0 0.0
        %1314 = vmatpush1.msra.mxu0 0.0
        %1315 = vmatprep.subr.mxu0 0.0
        %1316 = vmatpush1.msra.mxu0 0.0
        %1317 = vmatprep.subr.mxu0 0.0
        %1318 = vmatpush1.msra.mxu0 0.0
        %1319 = vmatprep.subr.mxu0 0.0
        %1320 = vmatpush1.msra.mxu0 0.0
        %1321 = vmatprep.subr.mxu0 0.0
        %1322 = vmatpush1.msra.mxu0 0.0
        %1323 = vmatprep.subr.mxu0 0.0
        %1324 = vmatpush1.msra.mxu0 0.0
        %1325 = vmatprep.subr.mxu0 0.0
        %1326 = vmatpush1.msra.mxu0 0.0
        %1327 = vmatprep.subr.mxu0 0.0
        %1328 = vmatpush1.msra.mxu0 0.0
        %1329 = vmatprep.subr.mxu0 0.0
        %1330 = vmatpush1.msra.mxu0 0.0
        %1331 = vmatprep.subr.mxu0 0.0
        %1332 = vmatpush1.msra.mxu0 0.0
        %1333 = vmatprep.subr.mxu0 0.0
        %1334 = vmatpush1.msra.mxu0 0.0
        %1335 = vmatprep.subr.mxu0 0.0
        %1336 = vmatpush1.msra.mxu0 0.0
        %1337 = vmatprep.subr.mxu0 0.0
        %1338 = vmatpush1.msra.mxu0 0.0
        %1339 = vmatprep.subr.mxu0 0.0
        %1340 = vmatpush1.msra.mxu0 0.0
        %1341 = vmatprep.subr.mxu0 0.0
        %1342 = vmatpush1.msra.mxu0 0.0
        %1343 = vmatprep.subr.mxu0 0.0
        %1344 = vmatpush1.msra.mxu0 0.0
        %1345 = vmatprep.subr.mxu0 0.0
        %1346 = vmatpush1.msra.mxu0 0.0
        %1347 = vmatprep.subr.mxu0 0.0
        %1348 = vmatpush1.msra.mxu0 0.0
        %1349 = vmatprep.subr.mxu0 0.0
        %1350 = vmatpush1.msra.mxu0 0.0
        %1351 = vmatprep.subr.mxu0 0.0
        %1352 = vmatpush1.msra.mxu0 0.0
        %1353 = vmatprep.subr.mxu0 0.0
        %1354 = vmatpush1.msra.mxu0 0.0
        %1355 = vmatprep.subr.mxu0 0.0
        %1356 = vmatpush1.msra.mxu0 0.0
        %1357 = vmatprep.subr.mxu0 0.0
        %1358 = vmatpush1.msra.mxu0 0.0
        %1359 = vmatprep.mubr.f32.mxu0 0.0
        %1360 = vmatmul.mubr.f32.gmra.mrb[0].mxu0 %v1293
        %v1361 = vpop.f32.mrb[0].mxu0
        %v1362 = vadd.f32 0.0, %v1361
        %v1363 = vpop.f32.mrb[0].mxu0
        %1364 = vdwg.mxu0
        %v1365 = vadd.f32 %v1289, %v1362
        %1366 = vst.msk [vmem:[#allocation3] sm:$0xff] %vm311, %v1365
        %v1367 = vld [vmem:[#allocation3] sm:$0xff]
        %v1368 = vld [vmem:[%s4] sm:$0x1]
        %v1370 = vlaneseq
        %v1371 = vshrl.u32 %v1370, 7
        %v1372 = vsub.s32 0, %v1371
        %v1373 = vrot.slane %v1368, %v1372
        %v1375 = vadd.f32 %v1367, %v1373
        %1376 = vst.msk [vmem:[%s305] sm:$0xff] %vm311, %v1375
        %s1377 = sand.u32 %s149, 1
        %s1378 = scalar_lea.sflag [#allocation6], %s1377
        %s1379 = sand.u32 %s149, 1
        %s1380 = smul.addr %s1379, 8
        %s1381 = scalar_lea.vmem [#allocation12], %s1380
        // Predicated region
        $region57: #{tpu_custom_call.1} parent=39 // pred_check
          %p1382 = pneg %p159
        $region58: #{tpu_custom_call.1} parent=39 // pred_check_branch
          %1384 = sbr.rel (%p1382) target = $region60
        $region59: #{tpu_custom_call.1} parent=39 // pred_region
          %s1386 = ssub.s32 128, 128
          %1387 = vsyncadd %s1378, %s1386
          %s1388 = smul.addr %s26, 128
          %s1389 = scalar_lea.hbm %s5, %s1388
          %s1391 = sshll.u32 %s1381, 4
          %s1392 = int_to_ptr.vmem [resolvable:$true] %s1391
          %1394 = dma.vmem_to_hbm [thread:$0]  %s1392, 128, %s1389, %s1378
        $region60: #{tpu_custom_call.1} parent=39 // pred_fallthru
          _
      $region40: #{tpu_custom_call.1} parent=5 // pred_fallthru
        _
      %p1395 = scmp.le.s32.totalorder 2, %s21
      // Predicated region
      $region61: #{tpu_custom_call.1} parent=5 // pred_check
        %p1396 = pneg %p1395
      $region62: #{tpu_custom_call.1} parent=5 // pred_check_branch
        %1398 = sbr.rel (%p1396) target = $region64
      $region63: #{tpu_custom_call.1} parent=5 // pred_region
        %s1399 = ssub.s32 %s21, 2
        // Predicated region
        $region65: #{tpu_custom_call.1} parent=63 // pred_check
          %p1400 = pneg %p165
        $region66: #{tpu_custom_call.1} parent=63 // pred_check_branch
          %1402 = sbr.rel (%p1400) target = $region68
        $region67: #{tpu_custom_call.1} parent=63 // pred_region
          %s1403 = sand.u32 %s150, 1
          %s1404 = scalar_lea.sflag [#allocation6], %s1403
          %s1405 = sand.u32 %s150, 1
          %s1406 = smul.addr %s1405, 8
          %s1407 = scalar_lea.vmem [#allocation12], %s1406
          %1408 = dma.done %s1404, 128
        $region68: #{tpu_custom_call.1} parent=63 // pred_fallthru
          _
      $region64: #{tpu_custom_call.1} parent=5 // pred_fallthru
        _
    $region6: #{tpu_custom_call.1} parent=1 // loop_footer
      %s25 = sadd.s32 1, %s21
    $region7: #{tpu_custom_call.1} parent=1 // loop_footer_branch
      %20 = sbr.rel target = $region3
    $region8: #{tpu_custom_call.1} parent=1 // loop_exit
      _
    %1409 = vsyncpa [#allocation5], 1
    %s1410 = scalar_lea.sflag [#allocation5], 1
    %1411 = vsyncpa %s1410, 1
    %1412 = vsyncpa [#allocation8], 1
    %s1413 = scalar_lea.sflag [#allocation8], 1
    %1414 = vsyncpa %s1413, 1
    %1415 = vsyncpa [#allocation11], 1
    %1416 = vsyncpa [#allocation6], 1
    %s1417 = scalar_lea.sflag [#allocation6], 1
    %1418 = vsyncpa %s1417, 1

</llo_original>
